<compile_context>
chip_gen: v7x
topology: tpu7x:2x2x1
jax: 0.10.0
libtpu: 0.0.40
codegen_flags: <defaults>
</compile_context>

<pallas_src>
import functools

import jax
import jax.numpy as jnp
from jax.experimental import pallas as pl
from jax.experimental.pallas import tpu as pltpu


# ---------------------------------------------------------------------------
# Kernel 1: fused bidirectional GRU layer.
#   grid = (question, direction, time); h persists in VMEM scratch across the
#   time axis; gate matmuls fused to width 3H; BN applied as (N,1) affine.
# ---------------------------------------------------------------------------

def _gru_layer_kernel(x_ref, scale_ref, shift_ref, wih_ref, bih_ref,
                      whh_ref, bhh_ref, o_ref, h_ref, *, hidden):
    t = pl.program_id(2)

    @pl.when(t == 0)
    def _():
        h_ref[...] = jnp.zeros_like(h_ref)

    H = hidden
    x = x_ref[0, 0] * scale_ref[...] + shift_ref[...]            # (N, Din)
    gx = jnp.dot(x, wih_ref[0, 0],
                 preferred_element_type=jnp.float32) + bih_ref[0, 0]   # (N, 3H)
    h = h_ref[...]
    gh = jnp.dot(h, whh_ref[0, 0],
                 preferred_element_type=jnp.float32) + bhh_ref[0, 0]   # (N, 3H)
    r = jax.nn.sigmoid(gx[:, :H] + gh[:, :H])
    z = jax.nn.sigmoid(gx[:, H:2 * H] + gh[:, H:2 * H])
    n = jnp.tanh(gx[:, 2 * H:] + r * gh[:, 2 * H:])
    h_new = (1.0 - z) * n + z * h
    h_ref[...] = h_new
    o_ref[0, 0, 0] = h_new


def gru_layer(x, scale, shift, p, hidden):
    """x: (Q=2, T, N, Din). Returns (Q, 2 directions, T, N, H)."""
    Q, T, N, Din = x.shape
    H = hidden
    G = 3 * H

    def tmap(d, t):            # forward: t ; backward: T-1-t
        return t + d * (T - 1 - 2 * t)

    return pl.pallas_call(
        functools.partial(_gru_layer_kernel, hidden=H),
        grid=(Q, 2, T),
        in_specs=[
            pl.BlockSpec((1, 1, N, Din), lambda q, d, t: (q, tmap(d, t), 0, 0)),
            pl.BlockSpec((N, 1), lambda q, d, t: (0, 0)),
            pl.BlockSpec((N, 1), lambda q, d, t: (0, 0)),
            pl.BlockSpec((1, 1, Din, G), lambda q, d, t: (q, d, 0, 0)),
            pl.BlockSpec((1, 1, 1, G), lambda q, d, t: (q, d, 0, 0)),
            pl.BlockSpec((1, 1, H, G), lambda q, d, t: (q, d, 0, 0)),
            pl.BlockSpec((1, 1, 1, G), lambda q, d, t: (q, d, 0, 0)),
        ],
        out_specs=pl.BlockSpec((1, 1, 1, N, H),
                               lambda q, d, t: (q, d, tmap(d, t), 0, 0)),
        out_shape=jax.ShapeDtypeStruct((Q, 2, T, N, H), jnp.float32),
        scratch_shapes=[pltpu.VMEM((N, H), jnp.float32)],
        compiler_params=pltpu.CompilerParams(
            dimension_semantics=("parallel", "arbitrary", "arbitrary")),
    )(x, scale, shift, p["wih"], p["bih"], p["whh"], p["bhh"])


def bi_gru_both(x_stacked, bn_scale, bn_shift, params, hidden):
    """2-layer bidirectional GRU over dim 1 (= PyTorch dim 0) for both questions."""
    L = x_stacked.shape[2]
    ones = jnp.ones((L, 1), jnp.float32)
    zeros = jnp.zeros((L, 1), jnp.float32)
    h0 = gru_layer(x_stacked, bn_scale, bn_shift, params["gru0"], hidden)
    x_l1 = jnp.concatenate([h0[:, 0], h0[:, 1]], axis=-1)       # (Q, T, N, 2H)
    h1 = gru_layer(x_l1, ones, zeros, params["gru1"], hidden)
    return jnp.concatenate([h1[:, 0], h1[:, 1]], axis=-1)        # (Q, T, N, 2H)


# ---------------------------------------------------------------------------
# Kernel 2: fused soft-alignment attention + mean/max pooling, lane-dense out.
# ---------------------------------------------------------------------------

def _soft_align_kernel(q1_ref, q2_ref, o_ref):
    q1 = q1_ref[0]                                               # (L, D)
    q2 = q2_ref[0]                                               # (L, D)
    att = jax.lax.dot_general(q1, q2, (((1,), (1,)), ((), ())),
                              preferred_element_type=jnp.float32)  # (L, L)
    w1 = jax.nn.softmax(att, axis=0)          # torch softmax(dim=1)
    w2 = jax.nn.softmax(att, axis=1).T        # torch softmax(dim=2).permute(0,2,1)
    a1 = jnp.dot(w1, q1, preferred_element_type=jnp.float32)     # (L, D)
    a2 = jnp.dot(w2, q2, preferred_element_type=jnp.float32)     # (L, D)
    o_ref[0] = jnp.concatenate(
        [jnp.mean(a1, axis=0, keepdims=True), jnp.max(a1, axis=0, keepdims=True),
         jnp.mean(a2, axis=0, keepdims=True), jnp.max(a2, axis=0, keepdims=True)],
        axis=1)                                                  # (1, 4D)


def soft_align_mean_max(q1_out, q2_out):
    B, L, D = q1_out.shape
    out = pl.pallas_call(
        _soft_align_kernel,
        grid=(B,),
        in_specs=(pl.BlockSpec((1, L, D), lambda b: (b, 0, 0)),
                  pl.BlockSpec((1, L, D), lambda b: (b, 0, 0))),
        out_specs=pl.BlockSpec((1, 1, 4 * D), lambda b: (b, 0, 0)),
        out_shape=jax.ShapeDtypeStruct((B, 1, 4 * D), jnp.float32),
        compiler_params=pltpu.CompilerParams(dimension_semantics=("parallel",)),
    )(q1_out, q2_out)
    out = out.reshape(B, 4 * D)
    return (out[:, :D], out[:, D:2 * D], out[:, 2 * D:3 * D], out[:, 3 * D:])


# ---------------------------------------------------------------------------
# Kernel 3: all Inception conv branches for both questions as one matmul.
# ---------------------------------------------------------------------------

def _matmul_bias_relu_kernel(a_ref, w_ref, b_ref, o_ref):
    y = jnp.dot(a_ref[...], w_ref[...], preferred_element_type=jnp.float32)
    o_ref[...] = jnp.maximum(y + b_ref[...], 0.0)


def inception_features(q1_ncl, q2_ncl, conv_w, conv_b, kmax=7):
    """q*_ncl: (B, C, L). conv_w: (C*kmax, 6) packed branch filters."""
    B, C, L = q1_ncl.shape
    pad = (kmax - 1) // 2

    def im2col(x_ncl):
        x_pad = jnp.pad(x_ncl, ((0, 0), (0, 0), (pad, pad)))
        cols = jnp.stack([x_pad[:, :, j:j + L] for j in range(kmax)], axis=-1)
        return jnp.transpose(cols, (0, 2, 1, 3)).reshape(B * L, C * kmax)

    patches = jnp.concatenate([im2col(q1_ncl), im2col(q2_ncl)], axis=0)  # (2BL, C*k)
    nb = conv_w.shape[1]
    out = pl.pallas_call(
        _matmul_bias_relu_kernel,
        out_shape=jax.ShapeDtypeStruct((2 * B * L, nb), jnp.float32),
    )(patches, conv_w, conv_b)
    out = out.reshape(2, B, L, nb)
    out = jnp.transpose(out, (0, 1, 3, 2)).reshape(2, B, nb * L)
    return out[0], out[1]                                         # (B, 6L) each


# ---------------------------------------------------------------------------
# Kernel 4: fused FCSubtract + FCMultiply + concat + dense + sigmoid head.
# ---------------------------------------------------------------------------

def _head_kernel(s1_ref, s2_ref, wsub_ref, bsub_ref, wmul_ref, bmul_ref,
                 dwt_ref, dwb_ref, db_ref, o_ref):
    s1 = s1_ref[...]
    s2 = s2_ref[...]
    rs = jnp.maximum(jnp.dot(s1 - s2, wsub_ref[...],
                             preferred_element_type=jnp.float32) + bsub_ref[...], 0.0)
    rm = jnp.maximum(jnp.dot(s1 * s2, wmul_ref[...],
                             preferred_element_type=jnp.float32) + bmul_ref[...], 0.0)
    logits = (jnp.dot(rs, dwt_ref[...], preferred_element_type=jnp.float32)
              + jnp.dot(rm, dwb_ref[...], preferred_element_type=jnp.float32)
              + db_ref[...])
    o_ref[...] = jax.nn.sigmoid(logits)


# ---------------------------------------------------------------------------
# Full forward
# ---------------------------------------------------------------------------

def enhanced_rcnn_forward(params, q1, q2):
    emb = params["embedding"]
    x1 = emb[q1]                         # (B, L, D) embedding gather (JAX glue)
    x2 = emb[q2]
    B, L, D = x1.shape
    H = params["gru0"]["whh"].shape[2]

    # Eval-mode BatchNorm1d(max_len): per-L affine, applied inside GRU layer 0.
    bn = params["bn"]
    inv = bn["gamma"] * jax.lax.rsqrt(bn["var"] + 1e-5)
    bn_scale = inv.reshape(L, 1)
    bn_shift = (bn["beta"] - bn["mean"] * inv).reshape(L, 1)
    # Dropout: identity in eval mode.

    x = jnp.stack([x1, x2], axis=0)                       # (2, T=B, N=L, D)
    rnn_out = bi_gru_both(x, bn_scale, bn_shift, params, H)   # (2, B, L, 2H)
    q1_output, q2_output = rnn_out[0], rnn_out[1]

    s1_mean, s1_max, s2_mean, s2_max = soft_align_mean_max(q1_output, q2_output)

    q1_perm = jnp.transpose(q1_output, (0, 2, 1))         # (B, 2H, L)
    q2_perm = jnp.transpose(q2_output, (0, 2, 1))
    s1_cnn, s2_cnn = inception_features(q1_perm, q2_perm,
                                        params["conv_w"], params["conv_b"])

    sentence1 = jnp.concatenate([s1_mean, s1_cnn, s1_max], axis=1)
    sentence2 = jnp.concatenate([s2_mean, s2_cnn, s2_max], axis=1)

    fc = params["fc_sub_w"].shape[1]
    nc = params["dense_b"].shape[1]
    return pl.pallas_call(
        _head_kernel,
        out_shape=jax.ShapeDtypeStruct((sentence1.shape[0], nc), jnp.float32),
    )(sentence1, sentence2,
      params["fc_sub_w"], params["fc_sub_b"],
      params["fc_mul_w"], params["fc_mul_b"],
      params["dense_w"][:fc], params["dense_w"][fc:], params["dense_b"])


# ---------------------------------------------------------------------------
# Deterministic parameter initialization (all float32; kernel sizes are static
# Python ints used only here, never placed into the jitted params pytree).
# ---------------------------------------------------------------------------

def init_params(key, vocab, embed_dim, max_len, lstm_dim, linear_size, num_class):
    H = lstm_dim
    fc_out = linear_size // 2
    in_dims = max_len * 2 * 3 + lstm_dim * 2 * 2
    C = 2 * H
    keys = iter(jax.random.split(key, 256))

    def nrm(shape, scale=0.1):
        return scale * jax.random.normal(next(keys), shape, dtype=jnp.float32)

    def gru_layer_params(din):
        # Stacked over (question=2, direction=2); gates fused along last dim (r|z|n).
        return {
            "wih": nrm((2, 2, din, 3 * H)),
            "bih": nrm((2, 2, 1, 3 * H)),
            "whh": nrm((2, 2, H, 3 * H)),
            "bhh": nrm((2, 2, 1, 3 * H)),
        }

    # Pack the six conv branches (cnn1:(1,3), cnn2:(3,5), cnn3:(5,7)) into one
    # (C*kmax, 6) weight, each filter centered inside a kmax=7 window.
    kmax = 7
    branch_ks = [1, 3, 3, 5, 5, 7]
    cols, biases = [], []
    for k in branch_ks:
        w = nrm((C, k))
        off = (kmax - k) // 2
        w_full = jnp.zeros((C, kmax), jnp.float32).at[:, off:off + k].set(w)
        cols.append(w_full.reshape(C * kmax))
        biases.append(nrm((1,)))
    conv_w = jnp.stack(cols, axis=1)                       # (C*kmax, 6)
    conv_b = jnp.concatenate(biases).reshape(1, len(branch_ks))

    params = {
        "embedding": nrm((vocab, embed_dim), 1.0),
        "bn": {
            "gamma": 1.0 + 0.01 * jnp.arange(max_len, dtype=jnp.float32),
            "beta": 0.02 * jnp.arange(max_len, dtype=jnp.float32),
            "mean": 0.01 * jnp.arange(max_len, dtype=jnp.float32),
            "var": 1.0 + 0.03 * jnp.arange(max_len, dtype=jnp.float32),
        },
        "gru0": gru_layer_params(embed_dim),
        "gru1": gru_layer_params(2 * H),
        "conv_w": conv_w,
        "conv_b": conv_b,
        "fc_sub_w": nrm((in_dims, fc_out)), "fc_sub_b": nrm((1, fc_out)),
        "fc_mul_w": nrm((in_dims, fc_out)), "fc_mul_b": nrm((1, fc_out)),
        "dense_w": nrm((2 * fc_out, num_class)), "dense_b": nrm((1, num_class)),
    }
    return params


# ---------------------------------------------------------------------------
# Main
# ---------------------------------------------------------------------------

if __name__ == "__main__":
    B, max_len, embed_dim, lstm_dim, linear_size, num_class = 2, 8, 32, 16, 32, 1
    vocab = 50

    key = jax.random.PRNGKey(0)
    k_param, k_q1, k_q2 = jax.random.split(key, 3)
    params = init_params(k_param, vocab, embed_dim, max_len, lstm_dim,
                         linear_size, num_class)

    q1 = jax.random.randint(k_q1, (B, max_len), 0, vocab, dtype=jnp.int32)
    q2 = jax.random.randint(k_q2, (B, max_len), 0, vocab, dtype=jnp.int32)

    fwd = jax.jit(enhanced_rcnn_forward)
    out = fwd(params, q1, q2)
    out = jax.block_until_ready(out)

    assert out.shape == (B, num_class)
    assert bool(jnp.all(jnp.isfinite(out)))
    assert bool(jnp.all((out >= 0.0) & (out <= 1.0)))
    print("KERNEL_OK")
</pallas_src>

<mosaic_0001>
module attributes {stable_mosaic.version = 11 : i64} {
  func.func @_gru_layer_kernel(%arg0: i32, %arg1: i32, %arg2: i32, %arg3: memref<1x1x8x32xf32, #tpu.memory_space<vmem>>, %arg4: memref<8x1xf32, #tpu.memory_space<vmem>>, %arg5: memref<8x1xf32, #tpu.memory_space<vmem>>, %arg6: memref<1x1x32x48xf32, #tpu.memory_space<vmem>>, %arg7: memref<1x1x1x48xf32, #tpu.memory_space<vmem>>, %arg8: memref<1x1x16x48xf32, #tpu.memory_space<vmem>>, %arg9: memref<1x1x1x48xf32, #tpu.memory_space<vmem>>, %arg10: memref<1x1x1x8x16xf32, #tpu.memory_space<vmem>>, %arg11: memref<8x16xf32, #tpu.memory_space<vmem>>) attributes {dimension_semantics = [#tpu.dimension_semantics<parallel>, #tpu.dimension_semantics<arbitrary>, #tpu.dimension_semantics<arbitrary>], iteration_bounds = array<i64: 2, 2, 2>, scalar_prefetch = 0 : i64, scratch_operands = 1 : i64, tpu.core_type = #tpu.core_type<tc>, window_params = [{transform_indices = @transform_0, window_bounds = array<i64: 1, 1, 8, 32>}, {pipeline_mode = #tpu.pipeline_mode<synchronous>, transform_indices = @transform_1, window_bounds = array<i64: 8, 1>}, {pipeline_mode = #tpu.pipeline_mode<synchronous>, transform_indices = @transform_2, window_bounds = array<i64: 8, 1>}, {transform_indices = @transform_3, window_bounds = array<i64: 1, 1, 32, 48>}, {transform_indices = @transform_4, window_bounds = array<i64: 1, 1, 1, 48>}, {transform_indices = @transform_5, window_bounds = array<i64: 1, 1, 16, 48>}, {transform_indices = @transform_6, window_bounds = array<i64: 1, 1, 1, 48>}, {transform_indices = @transform_7, window_bounds = array<i64: 1, 1, 1, 8, 16>}]} {
    %c0_i32 = arith.constant 0 : i32
    %0 = arith.cmpi eq, %arg2, %c0_i32 : i32
    %1 = arith.extui %0 : i1 to i32
    %c0_i32_0 = arith.constant 0 : i32
    %2 = arith.cmpi ne, %1, %c0_i32_0 : i32
    scf.if %2 {
      %cst_37 = arith.constant 0.000000e+00 : f32
      %56 = vector.broadcast %cst_37 : f32 to vector<8x16xf32>
      %c0_38 = arith.constant 0 : index
      %c0_39 = arith.constant 0 : index
      %57 = vector.load %arg11[%c0_38, %c0_39] : memref<8x16xf32, #tpu.memory_space<vmem>>, vector<8x16xf32>
      tpu.vector_store %arg11[%c0_38, %c0_39], %56 {strides = array<i32>} : memref<8x16xf32, #tpu.memory_space<vmem>>, vector<8x16xf32>,
    } else {
    }
    %c0 = arith.constant 0 : index
    %c0_1 = arith.constant 0 : index
    %c0_2 = arith.constant 0 : index
    %c0_3 = arith.constant 0 : index
    %3 = vector.load %arg3[%c0, %c0_1, %c0_2, %c0_3] : memref<1x1x8x32xf32, #tpu.memory_space<vmem>>, vector<1x1x8x32xf32>
    %4 = vector.shape_cast %3 : vector<1x1x8x32xf32> to vector<8x32xf32>
    %c0_4 = arith.constant 0 : index
    %c0_5 = arith.constant 0 : index
    %5 = vector.load %arg4[%c0_4, %c0_5] : memref<8x1xf32, #tpu.memory_space<vmem>>, vector<8x1xf32>
    %6 = vector.broadcast %5 : vector<8x1xf32> to vector<8x32xf32>
    %7 = arith.mulf %4, %6 : vector<8x32xf32>
    %c0_6 = arith.constant 0 : index
    %c0_7 = arith.constant 0 : index
    %8 = vector.load %arg5[%c0_6, %c0_7] : memref<8x1xf32, #tpu.memory_space<vmem>>, vector<8x1xf32>
    %9 = vector.broadcast %8 : vector<8x1xf32> to vector<8x32xf32>
    %10 = arith.addf %7, %9 : vector<8x32xf32>
    %c0_8 = arith.constant 0 : index
    %c0_9 = arith.constant 0 : index
    %c0_10 = arith.constant 0 : index
    %c0_11 = arith.constant 0 : index
    %11 = vector.load %arg6[%c0_8, %c0_9, %c0_10, %c0_11] : memref<1x1x32x48xf32, #tpu.memory_space<vmem>>, vector<1x1x32x48xf32>
    %12 = vector.shape_cast %11 : vector<1x1x32x48xf32> to vector<32x48xf32>
    %cst = arith.constant dense<0.000000e+00> : vector<8x48xf32>
    %13 = tpu.matmul %10, %12, %cst {dimension_numbers = #tpu.dot_dimension_numbers<[1], [0], [0], [1], [0, 0, 1, 1], [], []>} : vector<8x32xf32>, vector<32x48xf32>, vector<8x48xf32> -> vector<8x48xf32>
    %c0_12 = arith.constant 0 : index
    %c0_13 = arith.constant 0 : index
    %c0_14 = arith.constant 0 : index
    %c0_15 = arith.constant 0 : index
    %14 = vector.load %arg7[%c0_12, %c0_13, %c0_14, %c0_15] : memref<1x1x1x48xf32, #tpu.memory_space<vmem>>, vector<1x1x1x48xf32>
    %15 = vector.shape_cast %14 : vector<1x1x1x48xf32> to vector<1x48xf32>
    %16 = vector.broadcast %15 : vector<1x48xf32> to vector<8x48xf32>
    %17 = arith.addf %13, %16 : vector<8x48xf32>
    %c0_16 = arith.constant 0 : index
    %c0_17 = arith.constant 0 : index
    %18 = vector.load %arg11[%c0_16, %c0_17] : memref<8x16xf32, #tpu.memory_space<vmem>>, vector<8x16xf32>
    %c0_18 = arith.constant 0 : index
    %c0_19 = arith.constant 0 : index
    %c0_20 = arith.constant 0 : index
    %c0_21 = arith.constant 0 : index
    %19 = vector.load %arg8[%c0_18, %c0_19, %c0_20, %c0_21] : memref<1x1x16x48xf32, #tpu.memory_space<vmem>>, vector<1x1x16x48xf32>
    %20 = vector.shape_cast %19 : vector<1x1x16x48xf32> to vector<16x48xf32>
    %cst_22 = arith.constant dense<0.000000e+00> : vector<8x48xf32>
    %21 = tpu.matmul %18, %20, %cst_22 {dimension_numbers = #tpu.dot_dimension_numbers<[1], [0], [0], [1], [0, 0, 1, 1], [], []>} : vector<8x16xf32>, vector<16x48xf32>, vector<8x48xf32> -> vector<8x48xf32>
    %c0_23 = arith.constant 0 : index
    %c0_24 = arith.constant 0 : index
    %c0_25 = arith.constant 0 : index
    %c0_26 = arith.constant 0 : index
    %22 = vector.load %arg9[%c0_23, %c0_24, %c0_25, %c0_26] : memref<1x1x1x48xf32, #tpu.memory_space<vmem>>, vector<1x1x1x48xf32>
    %23 = vector.shape_cast %22 : vector<1x1x1x48xf32> to vector<1x48xf32>
    %24 = vector.broadcast %23 : vector<1x48xf32> to vector<8x48xf32>
    %25 = arith.addf %21, %24 : vector<8x48xf32>
    %26 = vector.extract_strided_slice %17 {offsets = [0, 0], sizes = [8, 16], strides = [1, 1]} : vector<8x48xf32> to vector<8x16xf32>
    %27 = vector.extract_strided_slice %25 {offsets = [0, 0], sizes = [8, 16], strides = [1, 1]} : vector<8x48xf32> to vector<8x16xf32>
    %28 = arith.addf %26, %27 : vector<8x16xf32>
    %29 = arith.negf %28 : vector<8x16xf32>
    %30 = math.exp %29 : vector<8x16xf32>
    %cst_27 = arith.constant 1.000000e+00 : f32
    %31 = vector.broadcast %cst_27 : f32 to vector<8x16xf32>
    %32 = arith.addf %31, %30 : vector<8x16xf32>
    %33 = arith.divf %31, %32 : vector<8x16xf32>
    %34 = vector.extract_strided_slice %17 {offsets = [0, 16], sizes = [8, 16], strides = [1, 1]} : vector<8x48xf32> to vector<8x16xf32>
    %35 = vector.extract_strided_slice %25 {offsets = [0, 16], sizes = [8, 16], strides = [1, 1]} : vector<8x48xf32> to vector<8x16xf32>
    %36 = arith.addf %34, %35 : vector<8x16xf32>
    %37 = arith.negf %36 : vector<8x16xf32>
    %38 = math.exp %37 : vector<8x16xf32>
    %cst_28 = arith.constant 1.000000e+00 : f32
    %39 = vector.broadcast %cst_28 : f32 to vector<8x16xf32>
    %40 = arith.addf %39, %38 : vector<8x16xf32>
    %41 = arith.divf %39, %40 : vector<8x16xf32>
    %42 = vector.extract_strided_slice %17 {offsets = [0, 32], sizes = [8, 16], strides = [1, 1]} : vector<8x48xf32> to vector<8x16xf32>
    %43 = vector.extract_strided_slice %25 {offsets = [0, 32], sizes = [8, 16], strides = [1, 1]} : vector<8x48xf32> to vector<8x16xf32>
    %44 = arith.mulf %33, %43 : vector<8x16xf32>
    %45 = arith.addf %42, %44 : vector<8x16xf32>
    %46 = math.tanh %45 : vector<8x16xf32>
    %cst_29 = arith.constant 1.000000e+00 : f32
    %47 = vector.broadcast %cst_29 : f32 to vector<8x16xf32>
    %48 = arith.subf %47, %41 : vector<8x16xf32>
    %49 = arith.mulf %48, %46 : vector<8x16xf32>
    %50 = arith.mulf %41, %18 : vector<8x16xf32>
    %51 = arith.addf %49, %50 : vector<8x16xf32>
    %c0_30 = arith.constant 0 : index
    %c0_31 = arith.constant 0 : index
    %52 = vector.load %arg11[%c0_30, %c0_31] : memref<8x16xf32, #tpu.memory_space<vmem>>, vector<8x16xf32>
    tpu.vector_store %arg11[%c0_30, %c0_31], %51 {strides = array<i32>} : memref<8x16xf32, #tpu.memory_space<vmem>>, vector<8x16xf32>,
    %c0_32 = arith.constant 0 : index
    %c0_33 = arith.constant 0 : index
    %c0_34 = arith.constant 0 : index
    %c0_35 = arith.constant 0 : index
    %c0_36 = arith.constant 0 : index
    %53 = vector.load %arg10[%c0_32, %c0_33, %c0_34, %c0_35, %c0_36] : memref<1x1x1x8x16xf32, #tpu.memory_space<vmem>>, vector<1x1x1x8x16xf32>
    %54 = vector.shape_cast %53 : vector<1x1x1x8x16xf32> to vector<8x16xf32>
    %55 = vector.shape_cast %51 : vector<8x16xf32> to vector<1x1x1x8x16xf32>
    tpu.vector_store %arg10[%c0_32, %c0_33, %c0_34, %c0_35, %c0_36], %55 {strides = array<i32>} : memref<1x1x1x8x16xf32, #tpu.memory_space<vmem>>, vector<1x1x1x8x16xf32>,
    return
  }
  func.func @transform_0(%arg0: i32, %arg1: i32, %arg2: i32) -> (i32, i32, i32, i32) {
    %c2_i32 = arith.constant 2 : i32
    %0 = arith.muli %c2_i32, %arg2 : i32
    %c1_i32 = arith.constant 1 : i32
    %1 = arith.subi %c1_i32, %0 : i32
    %2 = arith.muli %arg1, %1 : i32
    %3 = arith.addi %arg2, %2 : i32
    %c0_i32 = arith.constant 0 : i32
    %c0_i32_0 = arith.constant 0 : i32
    %c0_i32_1 = arith.constant 0 : i32
    return %arg0, %3, %c0_i32, %c0_i32_0 : i32, i32, i32, i32
  }
  func.func @transform_1(%arg0: i32, %arg1: i32, %arg2: i32) -> (i32, i32) {
    %c0_i32 = arith.constant 0 : i32
    %c0_i32_0 = arith.constant 0 : i32
    %c0_i32_1 = arith.constant 0 : i32
    return %c0_i32, %c0_i32_0 : i32, i32
  }
  func.func @transform_2(%arg0: i32, %arg1: i32, %arg2: i32) -> (i32, i32) {
    %c0_i32 = arith.constant 0 : i32
    %c0_i32_0 = arith.constant 0 : i32
    %c0_i32_1 = arith.constant 0 : i32
    return %c0_i32, %c0_i32_0 : i32, i32
  }
  func.func @transform_3(%arg0: i32, %arg1: i32, %arg2: i32) -> (i32, i32, i32, i32) {
    %c0_i32 = arith.constant 0 : i32
    %c0_i32_0 = arith.constant 0 : i32
    %c0_i32_1 = arith.constant 0 : i32
    return %arg0, %arg1, %c0_i32, %c0_i32_0 : i32, i32, i32, i32
  }
  func.func @transform_4(%arg0: i32, %arg1: i32, %arg2: i32) -> (i32, i32, i32, i32) {
    %c0_i32 = arith.constant 0 : i32
    %c0_i32_0 = arith.constant 0 : i32
    %c0_i32_1 = arith.constant 0 : i32
    return %arg0, %arg1, %c0_i32, %c0_i32_0 : i32, i32, i32, i32
  }
  func.func @transform_5(%arg0: i32, %arg1: i32, %arg2: i32) -> (i32, i32, i32, i32) {
    %c0_i32 = arith.constant 0 : i32
    %c0_i32_0 = arith.constant 0 : i32
    %c0_i32_1 = arith.constant 0 : i32
    return %arg0, %arg1, %c0_i32, %c0_i32_0 : i32, i32, i32, i32
  }
  func.func @transform_6(%arg0: i32, %arg1: i32, %arg2: i32) -> (i32, i32, i32, i32) {
    %c0_i32 = arith.constant 0 : i32
    %c0_i32_0 = arith.constant 0 : i32
    %c0_i32_1 = arith.constant 0 : i32
    return %arg0, %arg1, %c0_i32, %c0_i32_0 : i32, i32, i32, i32
  }
  func.func @transform_7(%arg0: i32, %arg1: i32, %arg2: i32) -> (i32, i32, i32, i32, i32) {
    %c2_i32 = arith.constant 2 : i32
    %0 = arith.muli %c2_i32, %arg2 : i32
    %c1_i32 = arith.constant 1 : i32
    %1 = arith.subi %c1_i32, %0 : i32
    %2 = arith.muli %arg1, %1 : i32
    %3 = arith.addi %arg2, %2 : i32
    %c0_i32 = arith.constant 0 : i32
    %c0_i32_0 = arith.constant 0 : i32
    %c0_i32_1 = arith.constant 0 : i32
    return %arg0, %arg1, %3, %c0_i32, %c0_i32_0 : i32, i32, i32, i32, i32
  }
}

module attributes {stable_mosaic.version = 11 : i64} {
  func.func @_matmul_bias_relu_kernel(%arg0: memref<32x224xf32, #tpu.memory_space<vmem>>, %arg1: memref<224x6xf32, #tpu.memory_space<vmem>>, %arg2: memref<1x6xf32, #tpu.memory_space<vmem>>, %arg3: memref<32x6xf32, #tpu.memory_space<vmem>>) attributes {dimension_semantics = [], scalar_prefetch = 0 : i64, scratch_operands = 0 : i64, tpu.core_type = #tpu.core_type<tc>} {
    %c0 = arith.constant 0 : index
    %c0_0 = arith.constant 0 : index
    %0 = vector.load %arg0[%c0, %c0_0] : memref<32x224xf32, #tpu.memory_space<vmem>>, vector<32x224xf32>
    %c0_1 = arith.constant 0 : index
    %c0_2 = arith.constant 0 : index
    %1 = vector.load %arg1[%c0_1, %c0_2] : memref<224x6xf32, #tpu.memory_space<vmem>>, vector<224x6xf32>
    %cst = arith.constant dense<0.000000e+00> : vector<32x6xf32>
    %2 = tpu.matmul %0, %1, %cst {dimension_numbers = #tpu.dot_dimension_numbers<[1], [0], [0], [1], [0, 0, 1, 1], [], []>} : vector<32x224xf32>, vector<224x6xf32>, vector<32x6xf32> -> vector<32x6xf32>
    %c0_3 = arith.constant 0 : index
    %c0_4 = arith.constant 0 : index
    %3 = vector.load %arg2[%c0_3, %c0_4] : memref<1x6xf32, #tpu.memory_space<vmem>>, vector<1x6xf32>
    %4 = vector.broadcast %3 : vector<1x6xf32> to vector<32x6xf32>
    %5 = arith.addf %2, %4 : vector<32x6xf32>
    %cst_5 = arith.constant 0.000000e+00 : f32
    %6 = vector.broadcast %cst_5 : f32 to vector<32x6xf32>
    %7 = arith.maximumf %5, %6 : vector<32x6xf32>
    %c0_6 = arith.constant 0 : index
    %c0_7 = arith.constant 0 : index
    %8 = vector.load %arg3[%c0_6, %c0_7] : memref<32x6xf32, #tpu.memory_space<vmem>>, vector<32x6xf32>
    tpu.vector_store %arg3[%c0_6, %c0_7], %7 {strides = array<i32>} : memref<32x6xf32, #tpu.memory_space<vmem>>, vector<32x6xf32>,
    return
  }
}

module attributes {stable_mosaic.version = 11 : i64} {
  func.func @_soft_align_kernel(%arg0: i32, %arg1: memref<1x8x32xf32, #tpu.memory_space<vmem>>, %arg2: memref<1x8x32xf32, #tpu.memory_space<vmem>>, %arg3: memref<1x1x128xf32, #tpu.memory_space<vmem>>) attributes {dimension_semantics = [#tpu.dimension_semantics<parallel>], iteration_bounds = array<i64: 2>, scalar_prefetch = 0 : i64, scratch_operands = 0 : i64, tpu.core_type = #tpu.core_type<tc>, window_params = [{transform_indices = @transform_0, window_bounds = array<i64: 1, 8, 32>}, {transform_indices = @transform_1, window_bounds = array<i64: 1, 8, 32>}, {transform_indices = @transform_2, window_bounds = array<i64: 1, 1, 128>}]} {
    %c0 = arith.constant 0 : index
    %c0_0 = arith.constant 0 : index
    %c0_1 = arith.constant 0 : index
    %0 = vector.load %arg1[%c0, %c0_0, %c0_1] : memref<1x8x32xf32, #tpu.memory_space<vmem>>, vector<1x8x32xf32>
    %1 = vector.shape_cast %0 : vector<1x8x32xf32> to vector<8x32xf32>
    %c0_2 = arith.constant 0 : index
    %c0_3 = arith.constant 0 : index
    %c0_4 = arith.constant 0 : index
    %2 = vector.load %arg2[%c0_2, %c0_3, %c0_4] : memref<1x8x32xf32, #tpu.memory_space<vmem>>, vector<1x8x32xf32>
    %3 = vector.shape_cast %2 : vector<1x8x32xf32> to vector<8x32xf32>
    %cst = arith.constant dense<0.000000e+00> : vector<8x8xf32>
    %4 = tpu.matmul %1, %3, %cst {dimension_numbers = #tpu.dot_dimension_numbers<[1], [1], [0], [0], [0, 0, 1, 0], [], []>} : vector<8x32xf32>, vector<8x32xf32>, vector<8x8xf32> -> vector<8x8xf32>
    %cst_5 = arith.constant dense<0xFF800000> : vector<8xf32>
    %5 = vector.multi_reduction <maximumf>, %4, %cst_5 [0] : vector<8x8xf32> to vector<8xf32>
    %cst_6 = arith.constant 0xFF800000 : f32
    %6 = vector.broadcast %cst_6 : f32 to vector<8xf32>
    %7 = arith.maximumf %6, %5 : vector<8xf32>
    %8 = vector.shape_cast %7 : vector<8xf32> to vector<1x8xf32>
    %9 = vector.broadcast %8 : vector<1x8xf32> to vector<8x8xf32>
    %10 = arith.subf %4, %9 : vector<8x8xf32>
    %11 = math.exp %10 : vector<8x8xf32>
    %cst_7 = arith.constant dense<0.000000e+00> : vector<8xf32>
    %12 = vector.multi_reduction <add>, %11, %cst_7 [0] : vector<8x8xf32> to vector<8xf32>
    %13 = vector.shape_cast %12 : vector<8xf32> to vector<1x8xf32>
    %14 = vector.broadcast %13 : vector<1x8xf32> to vector<8x8xf32>
    %15 = arith.divf %11, %14 : vector<8x8xf32>
    %cst_8 = arith.constant dense<0xFF800000> : vector<8xf32>
    %16 = vector.multi_reduction <maximumf>, %4, %cst_8 [1] : vector<8x8xf32> to vector<8xf32>
    %cst_9 = arith.constant 0xFF800000 : f32
    %17 = vector.broadcast %cst_9 : f32 to vector<8xf32>
    %18 = arith.maximumf %17, %16 : vector<8xf32>
    %19 = vector.shape_cast %18 : vector<8xf32> to vector<8x1xf32>
    %20 = vector.broadcast %19 : vector<8x1xf32> to vector<8x8xf32>
    %21 = arith.subf %4, %20 : vector<8x8xf32>
    %22 = math.exp %21 : vector<8x8xf32>
    %cst_10 = arith.constant dense<0.000000e+00> : vector<8xf32>
    %23 = vector.multi_reduction <add>, %22, %cst_10 [1] : vector<8x8xf32> to vector<8xf32>
    %24 = vector.shape_cast %23 : vector<8xf32> to vector<8x1xf32>
    %25 = vector.broadcast %24 : vector<8x1xf32> to vector<8x8xf32>
    %26 = arith.divf %22, %25 : vector<8x8xf32>
    %27 = tpu.transpose %26, [1, 0] : vector<8x8xf32> -> vector<8x8xf32>
    %cst_11 = arith.constant dense<0.000000e+00> : vector<8x32xf32>
    %28 = tpu.matmul %15, %1, %cst_11 {dimension_numbers = #tpu.dot_dimension_numbers<[1], [0], [0], [1], [0, 0, 1, 1], [], []>} : vector<8x8xf32>, vector<8x32xf32>, vector<8x32xf32> -> vector<8x32xf32>
    %cst_12 = arith.constant dense<0.000000e+00> : vector<8x32xf32>
    %29 = tpu.matmul %27, %3, %cst_12 {dimension_numbers = #tpu.dot_dimension_numbers<[1], [0], [0], [1], [0, 0, 1, 1], [], []>} : vector<8x8xf32>, vector<8x32xf32>, vector<8x32xf32> -> vector<8x32xf32>
    %cst_13 = arith.constant dense<0.000000e+00> : vector<32xf32>
    %30 = vector.multi_reduction <add>, %28, %cst_13 [0] : vector<8x32xf32> to vector<32xf32>
    %31 = vector.shape_cast %30 : vector<32xf32> to vector<1x32xf32>
    %cst_14 = arith.constant 8.000000e+00 : f32
    %32 = vector.broadcast %cst_14 : f32 to vector<1x32xf32>
    %33 = arith.divf %31, %32 : vector<1x32xf32>
    %cst_15 = arith.constant dense<0xFF800000> : vector<32xf32>
    %34 = vector.multi_reduction <maximumf>, %28, %cst_15 [0] : vector<8x32xf32> to vector<32xf32>
    %35 = vector.shape_cast %34 : vector<32xf32> to vector<1x32xf32>
    %cst_16 = arith.constant dense<0.000000e+00> : vector<32xf32>
    %36 = vector.multi_reduction <add>, %29, %cst_16 [0] : vector<8x32xf32> to vector<32xf32>
    %37 = vector.shape_cast %36 : vector<32xf32> to vector<1x32xf32>
    %cst_17 = arith.constant 8.000000e+00 : f32
    %38 = vector.broadcast %cst_17 : f32 to vector<1x32xf32>
    %39 = arith.divf %37, %38 : vector<1x32xf32>
    %cst_18 = arith.constant dense<0xFF800000> : vector<32xf32>
    %40 = vector.multi_reduction <maximumf>, %29, %cst_18 [0] : vector<8x32xf32> to vector<32xf32>
    %41 = vector.shape_cast %40 : vector<32xf32> to vector<1x32xf32>
    %42 = tpu.concatenate %33, %35, %39, %41 in 1 : vector<1x32xf32>, vector<1x32xf32>, vector<1x32xf32>, vector<1x32xf32> -> vector<1x128xf32>
    %c0_19 = arith.constant 0 : index
    %c0_20 = arith.constant 0 : index
    %c0_21 = arith.constant 0 : index
    %43 = vector.load %arg3[%c0_19, %c0_20, %c0_21] : memref<1x1x128xf32, #tpu.memory_space<vmem>>, vector<1x1x128xf32>
    %44 = vector.shape_cast %43 : vector<1x1x128xf32> to vector<1x128xf32>
    %45 = vector.shape_cast %42 : vector<1x128xf32> to vector<1x1x128xf32>
    tpu.vector_store %arg3[%c0_19, %c0_20, %c0_21], %45 {strides = array<i32>} : memref<1x1x128xf32, #tpu.memory_space<vmem>>, vector<1x1x128xf32>,
    return
  }
  func.func @transform_0(%arg0: i32) -> (i32, i32, i32) {
    %c0_i32 = arith.constant 0 : i32
    %c0_i32_0 = arith.constant 0 : i32
    %c0_i32_1 = arith.constant 0 : i32
    return %arg0, %c0_i32, %c0_i32_0 : i32, i32, i32
  }
  func.func @transform_1(%arg0: i32) -> (i32, i32, i32) {
    %c0_i32 = arith.constant 0 : i32
    %c0_i32_0 = arith.constant 0 : i32
    %c0_i32_1 = arith.constant 0 : i32
    return %arg0, %c0_i32, %c0_i32_0 : i32, i32, i32
  }
  func.func @transform_2(%arg0: i32) -> (i32, i32, i32) {
    %c0_i32 = arith.constant 0 : i32
    %c0_i32_0 = arith.constant 0 : i32
    %c0_i32_1 = arith.constant 0 : i32
    return %arg0, %c0_i32, %c0_i32_0 : i32, i32, i32
  }
}

module attributes {stable_mosaic.version = 11 : i64} {
  func.func @_head_kernel(%arg0: memref<2x112xf32, #tpu.memory_space<vmem>>, %arg1: memref<2x112xf32, #tpu.memory_space<vmem>>, %arg2: memref<112x16xf32, #tpu.memory_space<vmem>>, %arg3: memref<1x16xf32, #tpu.memory_space<vmem>>, %arg4: memref<112x16xf32, #tpu.memory_space<vmem>>, %arg5: memref<1x16xf32, #tpu.memory_space<vmem>>, %arg6: memref<16x1xf32, #tpu.memory_space<vmem>>, %arg7: memref<16x1xf32, #tpu.memory_space<vmem>>, %arg8: memref<1x1xf32, #tpu.memory_space<vmem>>, %arg9: memref<2x1xf32, #tpu.memory_space<vmem>>) attributes {dimension_semantics = [], scalar_prefetch = 0 : i64, scratch_operands = 0 : i64, tpu.core_type = #tpu.core_type<tc>} {
    %c0 = arith.constant 0 : index
    %c0_0 = arith.constant 0 : index
    %0 = vector.load %arg0[%c0, %c0_0] : memref<2x112xf32, #tpu.memory_space<vmem>>, vector<2x112xf32>
    %c0_1 = arith.constant 0 : index
    %c0_2 = arith.constant 0 : index
    %1 = vector.load %arg1[%c0_1, %c0_2] : memref<2x112xf32, #tpu.memory_space<vmem>>, vector<2x112xf32>
    %2 = arith.subf %0, %1 : vector<2x112xf32>
    %c0_3 = arith.constant 0 : index
    %c0_4 = arith.constant 0 : index
    %3 = vector.load %arg2[%c0_3, %c0_4] : memref<112x16xf32, #tpu.memory_space<vmem>>, vector<112x16xf32>
    %cst = arith.constant dense<0.000000e+00> : vector<2x16xf32>
    %4 = tpu.matmul %2, %3, %cst {dimension_numbers = #tpu.dot_dimension_numbers<[1], [0], [0], [1], [0, 0, 1, 1], [], []>} : vector<2x112xf32>, vector<112x16xf32>, vector<2x16xf32> -> vector<2x16xf32>
    %c0_5 = arith.constant 0 : index
    %c0_6 = arith.constant 0 : index
    %5 = vector.load %arg3[%c0_5, %c0_6] : memref<1x16xf32, #tpu.memory_space<vmem>>, vector<1x16xf32>
    %6 = vector.broadcast %5 : vector<1x16xf32> to vector<2x16xf32>
    %7 = arith.addf %4, %6 : vector<2x16xf32>
    %cst_7 = arith.constant 0.000000e+00 : f32
    %8 = vector.broadcast %cst_7 : f32 to vector<2x16xf32>
    %9 = arith.maximumf %7, %8 : vector<2x16xf32>
    %10 = arith.mulf %0, %1 : vector<2x112xf32>
    %c0_8 = arith.constant 0 : index
    %c0_9 = arith.constant 0 : index
    %11 = vector.load %arg4[%c0_8, %c0_9] : memref<112x16xf32, #tpu.memory_space<vmem>>, vector<112x16xf32>
    %cst_10 = arith.constant dense<0.000000e+00> : vector<2x16xf32>
    %12 = tpu.matmul %10, %11, %cst_10 {dimension_numbers = #tpu.dot_dimension_numbers<[1], [0], [0], [1], [0, 0, 1, 1], [], []>} : vector<2x112xf32>, vector<112x16xf32>, vector<2x16xf32> -> vector<2x16xf32>
    %c0_11 = arith.constant 0 : index
    %c0_12 = arith.constant 0 : index
    %13 = vector.load %arg5[%c0_11, %c0_12] : memref<1x16xf32, #tpu.memory_space<vmem>>, vector<1x16xf32>
    %14 = vector.broadcast %13 : vector<1x16xf32> to vector<2x16xf32>
    %15 = arith.addf %12, %14 : vector<2x16xf32>
    %cst_13 = arith.constant 0.000000e+00 : f32
    %16 = vector.broadcast %cst_13 : f32 to vector<2x16xf32>
    %17 = arith.maximumf %15, %16 : vector<2x16xf32>
    %c0_14 = arith.constant 0 : index
    %c0_15 = arith.constant 0 : index
    %18 = vector.load %arg6[%c0_14, %c0_15] : memref<16x1xf32, #tpu.memory_space<vmem>>, vector<16x1xf32>
    %cst_16 = arith.constant dense<0.000000e+00> : vector<2x1xf32>
    %19 = tpu.matmul %9, %18, %cst_16 {dimension_numbers = #tpu.dot_dimension_numbers<[1], [0], [0], [1], [0, 0, 1, 1], [], []>} : vector<2x16xf32>, vector<16x1xf32>, vector<2x1xf32> -> vector<2x1xf32>
    %c0_17 = arith.constant 0 : index
    %c0_18 = arith.constant 0 : index
    %20 = vector.load %arg7[%c0_17, %c0_18] : memref<16x1xf32, #tpu.memory_space<vmem>>, vector<16x1xf32>
    %cst_19 = arith.constant dense<0.000000e+00> : vector<2x1xf32>
    %21 = tpu.matmul %17, %20, %cst_19 {dimension_numbers = #tpu.dot_dimension_numbers<[1], [0], [0], [1], [0, 0, 1, 1], [], []>} : vector<2x16xf32>, vector<16x1xf32>, vector<2x1xf32> -> vector<2x1xf32>
    %22 = arith.addf %19, %21 : vector<2x1xf32>
    %c0_20 = arith.constant 0 : index
    %c0_21 = arith.constant 0 : index
    %23 = vector.load %arg8[%c0_20, %c0_21] : memref<1x1xf32, #tpu.memory_space<vmem>>, vector<1x1xf32>
    %24 = vector.broadcast %23 : vector<1x1xf32> to vector<2x1xf32>
    %25 = arith.addf %22, %24 : vector<2x1xf32>
    %26 = arith.negf %25 : vector<2x1xf32>
    %27 = math.exp %26 : vector<2x1xf32>
    %cst_22 = arith.constant 1.000000e+00 : f32
    %28 = vector.broadcast %cst_22 : f32 to vector<2x1xf32>
    %29 = arith.addf %28, %27 : vector<2x1xf32>
    %30 = arith.divf %28, %29 : vector<2x1xf32>
    %c0_23 = arith.constant 0 : index
    %c0_24 = arith.constant 0 : index
    %31 = vector.load %arg9[%c0_23, %c0_24] : memref<2x1xf32, #tpu.memory_space<vmem>>, vector<2x1xf32>
    tpu.vector_store %arg9[%c0_23, %c0_24], %30 {strides = array<i32>} : memref<2x1xf32, #tpu.memory_space<vmem>>, vector<2x1xf32>,
    return
  }
}

</mosaic_0001>

<llo_original>
// kernel: enhanced_rcnn_forward.8
$region0: #{enhanced_rcnn_forward.8}
  #allocation0 [shape = 'u32[]', space=smem, size = 0x4, offset = 0x4, fixed_abs, tag = 'smem constant byte address 0x4 - core index']
  #allocation1 [shape = 'u32[144,128]{1,0:T(1,128)}', space=vmem, size = 0x12000, scoped, tag = 'internal scratch']
  %s0 = inlined_call_operand.vmem [shape: f32[32,224], index: 0, kind: input, shape index: {}]
  %s1 = inlined_call_operand.vmem [shape: f32[224,6], index: 1, kind: input, shape index: {}]
  %s2 = inlined_call_operand.vmem [shape: f32[1,6], index: 2, kind: input, shape index: {}]
  %s3 = inlined_call_operand.vmem [shape: f32[32,6], index: 3, kind: output, shape index: {}]
  %s4 = sld [smem:[#allocation0]]
  $region22: #{enhanced_rcnn_forward.8} parent=0
    _
  %s6 = ssub.s32 1, %s4
  %s7 = scalar_select 0, %s6, %s4
  // Predicated region
  $region2: #{enhanced_rcnn_forward.8} parent=0 // pred_check
    _
  $region3: #{enhanced_rcnn_forward.8} parent=0 // pred_check_branch
    %9 = sbr.rel (0) target = $region5
  $region4: #{enhanced_rcnn_forward.8} parent=0 // pred_region
    _
  $region5: #{enhanced_rcnn_forward.8} parent=0 // pred_fallthru
    _
  // Predicated region
  $region6: #{enhanced_rcnn_forward.8} parent=0 // pred_check
    _
  $region7: #{enhanced_rcnn_forward.8} parent=0 // pred_check_branch
    %11 = sbr.rel (0) target = $region9
  $region8: #{enhanced_rcnn_forward.8} parent=0 // pred_region
    _
  $region9: #{enhanced_rcnn_forward.8} parent=0 // pred_fallthru
    _
  // Predicated region
  $region10: #{enhanced_rcnn_forward.8} parent=0 // pred_check
    _
  $region11: #{enhanced_rcnn_forward.8} parent=0 // pred_check_branch
    %13 = sbr.rel (0) target = $region13
  $region12: #{enhanced_rcnn_forward.8} parent=0 // pred_region
    _
  $region13: #{enhanced_rcnn_forward.8} parent=0 // pred_fallthru
    _
  %v14 = vld [vmem:[%s0] sm:$0xff]
  %v15 = vld [vmem:[%s0 + $0x8] sm:$0xff]
  %v16 = vld [vmem:[%s0 + $0x10] sm:$0xff]
  %v17 = vld [vmem:[%s0 + $0x18] sm:$0xff]
  %v18 = vld [vmem:[%s0 + $0x20] sm:$0xff]
  %v19 = vld [vmem:[%s0 + $0x28] sm:$0xff]
  %v20 = vld [vmem:[%s0 + $0x30] sm:$0xff]
  %v21 = vld [vmem:[%s0 + $0x38] sm:$0xff]
  %v22 = vld [vmem:[%s1] sm:$0xff]
  %v23 = vld [vmem:[%s1 + $0x8] sm:$0xff]
  %v24 = vld [vmem:[%s1 + $0x10] sm:$0xff]
  %v25 = vld [vmem:[%s1 + $0x18] sm:$0xff]
  %v26 = vld [vmem:[%s1 + $0x20] sm:$0xff]
  %v27 = vld [vmem:[%s1 + $0x28] sm:$0xff]
  %v28 = vld [vmem:[%s1 + $0x30] sm:$0xff]
  %v29 = vld [vmem:[%s1 + $0x38] sm:$0xff]
  %v30 = vld [vmem:[%s1 + $0x40] sm:$0xff]
  %v31 = vld [vmem:[%s1 + $0x48] sm:$0xff]
  %v32 = vld [vmem:[%s1 + $0x50] sm:$0xff]
  %v33 = vld [vmem:[%s1 + $0x58] sm:$0xff]
  %v34 = vld [vmem:[%s1 + $0x60] sm:$0xff]
  %v35 = vld [vmem:[%s1 + $0x68] sm:$0xff]
  %v36 = vld [vmem:[%s1 + $0x70] sm:$0xff]
  %v37 = vld [vmem:[%s1 + $0x78] sm:$0xff]
  %v38 = vld [vmem:[%s1 + $0x80] sm:$0xff]
  %v39 = vld [vmem:[%s1 + $0x88] sm:$0xff]
  %v40 = vld [vmem:[%s1 + $0x90] sm:$0xff]
  %v41 = vld [vmem:[%s1 + $0x98] sm:$0xff]
  %v42 = vld [vmem:[%s1 + $0xa0] sm:$0xff]
  %v43 = vld [vmem:[%s1 + $0xa8] sm:$0xff]
  %v44 = vld [vmem:[%s1 + $0xb0] sm:$0xff]
  %v45 = vld [vmem:[%s1 + $0xb8] sm:$0xff]
  %v46 = vld [vmem:[%s1 + $0xc0] sm:$0xff]
  %v47 = vld [vmem:[%s1 + $0xc8] sm:$0xff]
  %v48 = vld [vmem:[%s1 + $0xd0] sm:$0xff]
  %v49 = vld [vmem:[%s1 + $0xd8] sm:$0xff]
  %v50 = vld [vmem:[%s2] sm:$0x1]
  %v52 = vlaneseq
  %v53 = vshrl.u32 %v52, 7
  %v54 = vsub.s32 0, %v53
  %v55 = vrot.slane %v50, %v54
  %vm57 = vcmask 785408
  %v59 = vsel %vm57, %v15, 0
  %v62 = vsel %vm57, %v17, 0
  %v65 = vsel %vm57, %v19, 0
  %v68 = vsel %vm57, %v21, 0
  %70 = vmatprep.subr.mxu0 0.0
  %71 = vmatpush1.msra.mxu0 %v22
  %72 = vmatprep.subr.mxu0 0.0
  %73 = vmatpush1.msra.mxu0 %v23
  %74 = vmatprep.subr.mxu0 0.0
  %75 = vmatpush1.msra.mxu0 %v24
  %76 = vmatprep.subr.mxu0 0.0
  %77 = vmatpush1.msra.mxu0 %v25
  %78 = vmatprep.subr.mxu0 0.0
  %79 = vmatpush1.msra.mxu0 %v26
  %80 = vmatprep.subr.mxu0 0.0
  %81 = vmatpush1.msra.mxu0 %v27
  %82 = vmatprep.subr.mxu0 0.0
  %83 = vmatpush1.msra.mxu0 %v28
  %84 = vmatprep.subr.mxu0 0.0
  %85 = vmatpush1.msra.mxu0 %v29
  %86 = vmatprep.subr.mxu0 0.0
  %87 = vmatpush1.msra.mxu0 %v30
  %88 = vmatprep.subr.mxu0 0.0
  %89 = vmatpush1.msra.mxu0 %v31
  %90 = vmatprep.subr.mxu0 0.0
  %91 = vmatpush1.msra.mxu0 %v32
  %92 = vmatprep.subr.mxu0 0.0
  %93 = vmatpush1.msra.mxu0 %v33
  %94 = vmatprep.subr.mxu0 0.0
  %95 = vmatpush1.msra.mxu0 %v34
  %96 = vmatprep.subr.mxu0 0.0
  %97 = vmatpush1.msra.mxu0 %v35
  %98 = vmatprep.subr.mxu0 0.0
  %99 = vmatpush1.msra.mxu0 %v36
  %100 = vmatprep.subr.mxu0 0.0
  %101 = vmatpush1.msra.mxu0 %v37
  %102 = vmatprep.subr.mxu0 0.0
  %103 = vmatpush1.msra.mxu0 %v38
  %104 = vmatprep.subr.mxu0 0.0
  %105 = vmatpush1.msra.mxu0 %v39
  %106 = vmatprep.subr.mxu0 0.0
  %107 = vmatpush1.msra.mxu0 %v40
  %108 = vmatprep.subr.mxu0 0.0
  %109 = vmatpush1.msra.mxu0 %v41
  %110 = vmatprep.subr.mxu0 0.0
  %111 = vmatpush1.msra.mxu0 %v42
  %112 = vmatprep.subr.mxu0 0.0
  %113 = vmatpush1.msra.mxu0 %v43
  %114 = vmatprep.subr.mxu0 0.0
  %115 = vmatpush1.msra.mxu0 %v44
  %116 = vmatprep.subr.mxu0 0.0
  %117 = vmatpush1.msra.mxu0 %v45
  %118 = vmatprep.subr.mxu0 0.0
  %119 = vmatpush1.msra.mxu0 %v46
  %120 = vmatprep.subr.mxu0 0.0
  %121 = vmatpush1.msra.mxu0 %v47
  %122 = vmatprep.subr.mxu0 0.0
  %123 = vmatpush1.msra.mxu0 %v48
  %124 = vmatprep.subr.mxu0 0.0
  %125 = vmatpush1.msra.mxu0 %v49
  %126 = vmatprep.subr.mxu0 0.0
  %127 = vmatpush1.msra.mxu0 0.0
  %128 = vmatprep.subr.mxu0 0.0
  %129 = vmatpush1.msra.mxu0 0.0
  %130 = vmatprep.subr.mxu0 0.0
  %131 = vmatpush1.msra.mxu0 0.0
  %132 = vmatprep.subr.mxu0 0.0
  %133 = vmatpush1.msra.mxu0 0.0
  %134 = vmatprep.mubr.f32.mxu0 %v59
  %135 = vmatmul.mubr.f32.gmra.mrb[0].mxu0 %v14
  %v136 = vpop.f32.mrb[0].mxu0
  %v137 = vadd.f32 %v55, %v136
  %v138 = vpop.f32.mrb[0].mxu0
  %139 = vmatprep.mubr.f32.mxu0 %v62
  %140 = vmatmul.mubr.f32.gmra.mrb[0].mxu0 %v16
  %v141 = vpop.f32.mrb[0].mxu0
  %v142 = vadd.f32 %v55, %v141
  %v143 = vpop.f32.mrb[0].mxu0
  %144 = vmatprep.mubr.f32.mxu0 %v65
  %145 = vmatmul.mubr.f32.gmra.mrb[0].mxu0 %v18
  %v146 = vpop.f32.mrb[0].mxu0
  %v147 = vadd.f32 %v55, %v146
  %v148 = vpop.f32.mrb[0].mxu0
  %149 = vmatprep.mubr.f32.mxu0 %v68
  %150 = vmatmul.mubr.f32.gmra.mrb[0].mxu0 %v20
  %v151 = vpop.f32.mrb[0].mxu0
  %v152 = vadd.f32 %v55, %v151
  %v153 = vpop.f32.mrb[0].mxu0
  %154 = vdwg.mxu0
  %v155 = vmax.f32 %v137, 0.0
  %v156 = vmax.f32 %v142, 0.0
  %v157 = vmax.f32 %v147, 0.0
  %v158 = vmax.f32 %v152, 0.0
  %vm159 = vcmask 48128
  %160 = vst.msk [vmem:[%s3] sm:$0xff] %vm159, %v155
  %161 = vst.msk [vmem:[%s3 + $0x8] sm:$0xff] %vm159, %v156
  %162 = vst.msk [vmem:[%s3 + $0x10] sm:$0xff] %vm159, %v157
  %163 = vst.msk [vmem:[%s3 + $0x18] sm:$0xff] %vm159, %v158
  // Predicated region
  $region14: #{enhanced_rcnn_forward.8} parent=0 // pred_check
    _
  $region15: #{enhanced_rcnn_forward.8} parent=0 // pred_check_branch
    %165 = sbr.rel (0) target = $region17
  $region16: #{enhanced_rcnn_forward.8} parent=0 // pred_region
    _
  $region17: #{enhanced_rcnn_forward.8} parent=0 // pred_fallthru
    _
  // Predicated region
  $region18: #{enhanced_rcnn_forward.8} parent=0 // pred_check
    _
  $region19: #{enhanced_rcnn_forward.8} parent=0 // pred_check_branch
    %167 = sbr.rel (0) target = $region21
  $region20: #{enhanced_rcnn_forward.8} parent=0 // pred_region
    _
  $region21: #{enhanced_rcnn_forward.8} parent=0 // pred_fallthru
    _

// kernel: enhanced_rcnn_forward.5
$region0: #{enhanced_rcnn_forward.5}
  #allocation0 [shape = 'u32[]', space=smem, size = 0x4, offset = 0x4, fixed_abs, tag = 'smem constant byte address 0x4 - core index']
  #allocation1 [shape = 'u32[144,128]{1,0:T(1,128)}', space=vmem, size = 0x12000, scoped, tag = 'internal scratch']
  #allocation2 [shape = 'f32[8,16]{1,0:T(8,128)}', space=vmem, size = 0x1000, scoped, tag = 'scratch operand']
  %s0 = inlined_call_operand.vmem [shape: f32[2,2,8,32], index: 0, kind: input, shape index: {}]
  %s1 = inlined_call_operand.vmem [shape: f32[8,1], index: 1, kind: input, shape index: {}]
  %s2 = inlined_call_operand.vmem [shape: f32[8,1], index: 2, kind: input, shape index: {}]
  %s3 = inlined_call_operand.vmem [shape: f32[2,2,32,48], index: 3, kind: input, shape index: {}]
  %s4 = inlined_call_operand.vmem [shape: f32[2,2,1,48], index: 4, kind: input, shape index: {}]
  %s5 = inlined_call_operand.vmem [shape: f32[2,2,16,48], index: 5, kind: input, shape index: {}]
  %s6 = inlined_call_operand.vmem [shape: f32[2,2,1,48], index: 6, kind: input, shape index: {}]
  %s7 = inlined_call_operand.vmem [shape: f32[2,2,2,8,16], index: 7, kind: output, shape index: {}]
  %s8 = sld [smem:[#allocation0]]
  $region65: #{enhanced_rcnn_forward.5} parent=0
    _
  %s10 = ssub.s32 1, %s8
  %s11 = scalar_select 0, %s10, %s8
  loop: start=0, step=1, limit=10
  $region2: #{enhanced_rcnn_forward.5} parent=0 // loop_pre_header
    _
  $region3: #{enhanced_rcnn_forward.5} parent=0 // loop_header
    %s13 = sphi 0, %s17
    %p14 = scmp.ge.s32.totalorder %s13, 10
    %s20 = sphi 0, %s39
    %s21 = sphi 0, %s35
    %s22 = sphi 0, %s31
    %s23 = sphi 0, %s20
    %s24 = sphi 0, %s21
    %s25 = sphi 0, %s22
    %s26 = sphi 0, %s23
    %s27 = sphi 0, %s24
    %s28 = sphi 0, %s25
    %s52 = sphi 0, %s54
    %s55 = sphi 0, %s52
    %s56 = sphi 0, %s55
    %s72 = sphi 0, %s56
    %s76 = sphi 0, %s76
    %s78 = sphi 0, %s76
    %s79 = sphi 0, %s78
    %s93 = sphi 0, %s79
    %s97 = sphi 0, %s97
    %s99 = sphi 0, %s97
    %s100 = sphi 0, %s99
    %s114 = sphi 0, %s100
    %s122 = sphi 0, %s124
    %s125 = sphi 0, %s122
    %s126 = sphi 0, %s125
    %s142 = sphi 0, %s126
    %s150 = sphi 0, %s152
    %s153 = sphi 0, %s150
    %s154 = sphi 0, %s153
    %s170 = sphi 0, %s154
    %s178 = sphi 0, %s180
    %s181 = sphi 0, %s178
    %s182 = sphi 0, %s181
    %s198 = sphi 0, %s182
    %s206 = sphi 0, %s208
    %s209 = sphi 0, %s206
    %s210 = sphi 0, %s209
    %s226 = sphi 0, %s210
    %s244 = sphi 0, %s246
    %s247 = sphi 0, %s244
    %s248 = sphi 0, %s247
    %s264 = sphi 0, %s248
  $region4: #{enhanced_rcnn_forward.5} parent=0 // loop_header_branch
    %16 = sbr.rel (%p14) target = $region8
  $region5: #{enhanced_rcnn_forward.5} parent=0 // loop_body
    %s18 = ssub.s32 %s13, 1
    %s19 = ssub.s32 %s13, 2
    %s29 = sadd.s32 1, %s22
    %p30 = scmp.ge.s32.totalorder %s29, 2
    %s31 = scalar_select %p30, 0, %s29
    %s32 = sadd.s32 1, %s21
    %s33 = scalar_select %p30, %s32, %s21
    %p34 = scmp.ge.s32.totalorder %s33, 2
    %s35 = scalar_select %p34, 0, %s33
    %s36 = sadd.s32 1, %s20
    %s37 = scalar_select %p34, %s36, %s20
    %p38 = scmp.ge.s32.totalorder %s37, 2
    %s39 = scalar_select %p38, 0, %s37
    %s40 = smul.u32 %s22, 2
    %s41 = ssub.s32 1, %s40
    %s42 = smul.u32 %s21, %s41
    %s43 = sadd.s32 %s22, %s42
    %s44 = smul.u32 %s31, 2
    %s45 = ssub.s32 1, %s44
    %s46 = smul.u32 %s35, %s45
    %s47 = sadd.s32 %s31, %s46
    %s48 = ssub.s32 %s20, %s39
    %s49 = ssub.s32 %s43, %s47
    %s50 = sor.u32 %s48, %s49
    %p51 = scmp.eq.s32.totalorder %s50, 0
    %s53 = sadd.s32 %s52, 1
    %s54 = scalar_select %p51, %s52, %s53
    %p57 = pneg %p51
    %p58 = scmp.eq.s32.totalorder %s13, 7
    %p59 = por %p57, %p58
    %p60 = scmp.ne.s32.totalorder %s52, %s55
    %p61 = scmp.eq.s32.totalorder %s13, 0
    %p62 = por %p60, %p61
    %p63 = scmp.ne.s32.totalorder %s52, %s55
    %p64 = scmp.eq.s32.totalorder %s18, 7
    %p65 = por %p63, %p64
    %p66 = scmp.ne.s32.totalorder %s55, %s56
    %p67 = scmp.eq.s32.totalorder %s18, 0
    %p68 = por %p66, %p67
    %p69 = scmp.ne.s32.totalorder %s55, %s56
    %p70 = scmp.eq.s32.totalorder %s19, 7
    %p71 = por %p69, %p70
    %p73 = scmp.ne.s32.totalorder %s56, %s72
    %p74 = scmp.eq.s32.totalorder %s19, 0
    %p75 = por %p73, %p74
    %s77 = sadd.s32 %s76, 1
    %p80 = scmp.eq.s32.totalorder %s13, 7
    %p81 = scmp.ne.s32.totalorder %s76, %s78
    %p82 = scmp.eq.s32.totalorder %s13, 0
    %p83 = por %p81, %p82
    %p84 = scmp.ne.s32.totalorder %s76, %s78
    %p85 = scmp.eq.s32.totalorder %s18, 7
    %p86 = por %p84, %p85
    %p87 = scmp.ne.s32.totalorder %s78, %s79
    %p88 = scmp.eq.s32.totalorder %s18, 0
    %p89 = por %p87, %p88
    %p90 = scmp.ne.s32.totalorder %s78, %s79
    %p91 = scmp.eq.s32.totalorder %s19, 7
    %p92 = por %p90, %p91
    %p94 = scmp.ne.s32.totalorder %s79, %s93
    %p95 = scmp.eq.s32.totalorder %s19, 0
    %p96 = por %p94, %p95
    %s98 = sadd.s32 %s97, 1
    %p101 = scmp.eq.s32.totalorder %s13, 7
    %p102 = scmp.ne.s32.totalorder %s97, %s99
    %p103 = scmp.eq.s32.totalorder %s13, 0
    %p104 = por %p102, %p103
    %p105 = scmp.ne.s32.totalorder %s97, %s99
    %p106 = scmp.eq.s32.totalorder %s18, 7
    %p107 = por %p105, %p106
    %p108 = scmp.ne.s32.totalorder %s99, %s100
    %p109 = scmp.eq.s32.totalorder %s18, 0
    %p110 = por %p108, %p109
    %p111 = scmp.ne.s32.totalorder %s99, %s100
    %p112 = scmp.eq.s32.totalorder %s19, 7
    %p113 = por %p111, %p112
    %p115 = scmp.ne.s32.totalorder %s100, %s114
    %p116 = scmp.eq.s32.totalorder %s19, 0
    %p117 = por %p115, %p116
    %s118 = ssub.s32 %s20, %s39
    %s119 = ssub.s32 %s21, %s35
    %s120 = sor.u32 %s118, %s119
    %p121 = scmp.eq.s32.totalorder %s120, 0
    %s123 = sadd.s32 %s122, 1
    %s124 = scalar_select %p121, %s122, %s123
    %p127 = pneg %p121
    %p128 = scmp.eq.s32.totalorder %s13, 7
    %p129 = por %p127, %p128
    %p130 = scmp.ne.s32.totalorder %s122, %s125
    %p131 = scmp.eq.s32.totalorder %s13, 0
    %p132 = por %p130, %p131
    %p133 = scmp.ne.s32.totalorder %s122, %s125
    %p134 = scmp.eq.s32.totalorder %s18, 7
    %p135 = por %p133, %p134
    %p136 = scmp.ne.s32.totalorder %s125, %s126
    %p137 = scmp.eq.s32.totalorder %s18, 0
    %p138 = por %p136, %p137
    %p139 = scmp.ne.s32.totalorder %s125, %s126
    %p140 = scmp.eq.s32.totalorder %s19, 7
    %p141 = por %p139, %p140
    %p143 = scmp.ne.s32.totalorder %s126, %s142
    %p144 = scmp.eq.s32.totalorder %s19, 0
    %p145 = por %p143, %p144
    %s146 = ssub.s32 %s20, %s39
    %s147 = ssub.s32 %s21, %s35
    %s148 = sor.u32 %s146, %s147
    %p149 = scmp.eq.s32.totalorder %s148, 0
    %s151 = sadd.s32 %s150, 1
    %s152 = scalar_select %p149, %s150, %s151
    %p155 = pneg %p149
    %p156 = scmp.eq.s32.totalorder %s13, 7
    %p157 = por %p155, %p156
    %p158 = scmp.ne.s32.totalorder %s150, %s153
    %p159 = scmp.eq.s32.totalorder %s13, 0
    %p160 = por %p158, %p159
    %p161 = scmp.ne.s32.totalorder %s150, %s153
    %p162 = scmp.eq.s32.totalorder %s18, 7
    %p163 = por %p161, %p162
    %p164 = scmp.ne.s32.totalorder %s153, %s154
    %p165 = scmp.eq.s32.totalorder %s18, 0
    %p166 = por %p164, %p165
    %p167 = scmp.ne.s32.totalorder %s153, %s154
    %p168 = scmp.eq.s32.totalorder %s19, 7
    %p169 = por %p167, %p168
    %p171 = scmp.ne.s32.totalorder %s154, %s170
    %p172 = scmp.eq.s32.totalorder %s19, 0
    %p173 = por %p171, %p172
    %s174 = ssub.s32 %s20, %s39
    %s175 = ssub.s32 %s21, %s35
    %s176 = sor.u32 %s174, %s175
    %p177 = scmp.eq.s32.totalorder %s176, 0
    %s179 = sadd.s32 %s178, 1
    %s180 = scalar_select %p177, %s178, %s179
    %p183 = pneg %p177
    %p184 = scmp.eq.s32.totalorder %s13, 7
    %p185 = por %p183, %p184
    %p186 = scmp.ne.s32.totalorder %s178, %s181
    %p187 = scmp.eq.s32.totalorder %s13, 0
    %p188 = por %p186, %p187
    %p189 = scmp.ne.s32.totalorder %s178, %s181
    %p190 = scmp.eq.s32.totalorder %s18, 7
    %p191 = por %p189, %p190
    %p192 = scmp.ne.s32.totalorder %s181, %s182
    %p193 = scmp.eq.s32.totalorder %s18, 0
    %p194 = por %p192, %p193
    %p195 = scmp.ne.s32.totalorder %s181, %s182
    %p196 = scmp.eq.s32.totalorder %s19, 7
    %p197 = por %p195, %p196
    %p199 = scmp.ne.s32.totalorder %s182, %s198
    %p200 = scmp.eq.s32.totalorder %s19, 0
    %p201 = por %p199, %p200
    %s202 = ssub.s32 %s20, %s39
    %s203 = ssub.s32 %s21, %s35
    %s204 = sor.u32 %s202, %s203
    %p205 = scmp.eq.s32.totalorder %s204, 0
    %s207 = sadd.s32 %s206, 1
    %s208 = scalar_select %p205, %s206, %s207
    %p211 = pneg %p205
    %p212 = scmp.eq.s32.totalorder %s13, 7
    %p213 = por %p211, %p212
    %p214 = scmp.ne.s32.totalorder %s206, %s209
    %p215 = scmp.eq.s32.totalorder %s13, 0
    %p216 = por %p214, %p215
    %p217 = scmp.ne.s32.totalorder %s206, %s209
    %p218 = scmp.eq.s32.totalorder %s18, 7
    %p219 = por %p217, %p218
    %p220 = scmp.ne.s32.totalorder %s209, %s210
    %p221 = scmp.eq.s32.totalorder %s18, 0
    %p222 = por %p220, %p221
    %p223 = scmp.ne.s32.totalorder %s209, %s210
    %p224 = scmp.eq.s32.totalorder %s19, 7
    %p225 = por %p223, %p224
    %p227 = scmp.ne.s32.totalorder %s210, %s226
    %p228 = scmp.eq.s32.totalorder %s19, 0
    %p229 = por %p227, %p228
    %s230 = smul.u32 %s22, 2
    %s231 = ssub.s32 1, %s230
    %s232 = smul.u32 %s21, %s231
    %s233 = sadd.s32 %s22, %s232
    %s234 = smul.u32 %s31, 2
    %s235 = ssub.s32 1, %s234
    %s236 = smul.u32 %s35, %s235
    %s237 = sadd.s32 %s31, %s236
    %s238 = ssub.s32 %s20, %s39
    %s239 = ssub.s32 %s21, %s35
    %s240 = sor.u32 %s238, %s239
    %s241 = ssub.s32 %s233, %s237
    %s242 = sor.u32 %s240, %s241
    %p243 = scmp.eq.s32.totalorder %s242, 0
    %s245 = sadd.s32 %s244, 1
    %s246 = scalar_select %p243, %s244, %s245
    %p249 = pneg %p243
    %p250 = scmp.eq.s32.totalorder %s13, 7
    %p251 = por %p249, %p250
    %p252 = scmp.ne.s32.totalorder %s244, %s247
    %p253 = scmp.eq.s32.totalorder %s13, 0
    %p254 = por %p252, %p253
    %p255 = scmp.ne.s32.totalorder %s244, %s247
    %p256 = scmp.eq.s32.totalorder %s18, 7
    %p257 = por %p255, %p256
    %p258 = scmp.ne.s32.totalorder %s247, %s248
    %p259 = scmp.eq.s32.totalorder %s18, 0
    %p260 = por %p258, %p259
    %p261 = scmp.ne.s32.totalorder %s247, %s248
    %p262 = scmp.eq.s32.totalorder %s19, 7
    %p263 = por %p261, %p262
    %p265 = scmp.ne.s32.totalorder %s248, %s264
    %p266 = scmp.eq.s32.totalorder %s19, 0
    %p267 = por %p265, %p266
    %p268 = scmp.le.s32.totalorder 1, %s13
    %p269 = scmp.lt.s32.totalorder %s13, 9
    %p270 = pnand %p268, %p269
    %p271 = pneg %p270
    // Predicated region
    $region9: #{enhanced_rcnn_forward.5} parent=5 // pred_check
      _
    $region10: #{enhanced_rcnn_forward.5} parent=5 // pred_check_branch
      %273 = sbr.rel (%p270) target = $region12
    $region11: #{enhanced_rcnn_forward.5} parent=5 // pred_region
      %s274 = ssub.s32 %s13, 1
      // Predicated region
      $region13: #{enhanced_rcnn_forward.5} parent=11 // pred_check
        %p275 = pneg %p89
      $region14: #{enhanced_rcnn_forward.5} parent=11 // pred_check_branch
        %277 = sbr.rel (%p275) target = $region16
      $region15: #{enhanced_rcnn_forward.5} parent=11 // pred_region
        _
      $region16: #{enhanced_rcnn_forward.5} parent=11 // pred_fallthru
        _
      // Predicated region
      $region17: #{enhanced_rcnn_forward.5} parent=11 // pred_check
        %p278 = pneg %p110
      $region18: #{enhanced_rcnn_forward.5} parent=11 // pred_check_branch
        %280 = sbr.rel (%p278) target = $region20
      $region19: #{enhanced_rcnn_forward.5} parent=11 // pred_region
        _
      $region20: #{enhanced_rcnn_forward.5} parent=11 // pred_fallthru
        _
    $region12: #{enhanced_rcnn_forward.5} parent=5 // pred_fallthru
      _
    %p281 = scmp.lt.s32.totalorder %s13, 8
    // Predicated region
    $region21: #{enhanced_rcnn_forward.5} parent=5 // pred_check
      %p282 = pneg %p281
    $region22: #{enhanced_rcnn_forward.5} parent=5 // pred_check_branch
      %284 = sbr.rel (%p282) target = $region24
    $region23: #{enhanced_rcnn_forward.5} parent=5 // pred_region
      // Predicated region
      $region25: #{enhanced_rcnn_forward.5} parent=23 // pred_check
        %p285 = pneg %p62
      $region26: #{enhanced_rcnn_forward.5} parent=23 // pred_check_branch
        %287 = sbr.rel (%p285) target = $region28
      $region27: #{enhanced_rcnn_forward.5} parent=23 // pred_region
        %s288 = smul.u32 %s22, 2
        %s289 = ssub.s32 1, %s288
        %s290 = smul.u32 %s21, %s289
        %s291 = sadd.s32 %s22, %s290
        %p292 = scmp.lt.s32.totalorder %s20, 1
        %s293 = scalar_select %p292, %s20, 1
        %p294 = scmp.lt.s32.totalorder %s291, 1
        %s295 = scalar_select %p294, %s291, 1
        %s296 = smul.addr %s293, 2
        %s297 = sadd.s32 %s295, %s296
        %s298 = smul.addr %s297, 8
        %s299 = scalar_lea.vmem %s0, %s298
        %s300 = smul.u32 %s22, 2
        %s301 = ssub.s32 1, %s300
        %s302 = smul.u32 %s21, %s301
        %s303 = sadd.s32 %s22, %s302
      $region28: #{enhanced_rcnn_forward.5} parent=23 // pred_fallthru
        _
      // Predicated region
      $region29: #{enhanced_rcnn_forward.5} parent=23 // pred_check
        %p304 = pneg %p132
      $region30: #{enhanced_rcnn_forward.5} parent=23 // pred_check_branch
        %306 = sbr.rel (%p304) target = $region32
      $region31: #{enhanced_rcnn_forward.5} parent=23 // pred_region
        %p307 = scmp.lt.s32.totalorder %s20, 1
        %s308 = scalar_select %p307, %s20, 1
        %p309 = scmp.lt.s32.totalorder %s21, 1
        %s310 = scalar_select %p309, %s21, 1
        %s311 = smul.addr %s310, 4
        %s312 = smul.addr %s308, 8
        %s313 = sadd.s32 %s311, %s312
        %s314 = smul.addr %s313, 8
        %s315 = scalar_lea.vmem %s3, %s314
      $region32: #{enhanced_rcnn_forward.5} parent=23 // pred_fallthru
        _
      // Predicated region
      $region33: #{enhanced_rcnn_forward.5} parent=23 // pred_check
        %p316 = pneg %p160
      $region34: #{enhanced_rcnn_forward.5} parent=23 // pred_check_branch
        %318 = sbr.rel (%p316) target = $region36
      $region35: #{enhanced_rcnn_forward.5} parent=23 // pred_region
        %p319 = scmp.lt.s32.totalorder %s20, 1
        %s320 = scalar_select %p319, %s20, 1
        %p321 = scmp.lt.s32.totalorder %s21, 1
        %s322 = scalar_select %p321, %s21, 1
        %s323 = smul.addr %s320, 2
        %s324 = sadd.s32 %s322, %s323
        %s325 = scalar_lea.vmem %s4, %s324
      $region36: #{enhanced_rcnn_forward.5} parent=23 // pred_fallthru
        _
      // Predicated region
      $region37: #{enhanced_rcnn_forward.5} parent=23 // pred_check
        %p326 = pneg %p188
      $region38: #{enhanced_rcnn_forward.5} parent=23 // pred_check_branch
        %328 = sbr.rel (%p326) target = $region40
      $region39: #{enhanced_rcnn_forward.5} parent=23 // pred_region
        %p329 = scmp.lt.s32.totalorder %s20, 1
        %s330 = scalar_select %p329, %s20, 1
        %p331 = scmp.lt.s32.totalorder %s21, 1
        %s332 = scalar_select %p331, %s21, 1
        %s333 = smul.addr %s332, 2
        %s334 = smul.addr %s330, 4
        %s335 = sadd.s32 %s333, %s334
        %s336 = smul.addr %s335, 8
        %s337 = scalar_lea.vmem %s5, %s336
      $region40: #{enhanced_rcnn_forward.5} parent=23 // pred_fallthru
        _
      // Predicated region
      $region41: #{enhanced_rcnn_forward.5} parent=23 // pred_check
        %p338 = pneg %p216
      $region42: #{enhanced_rcnn_forward.5} parent=23 // pred_check_branch
        %340 = sbr.rel (%p338) target = $region44
      $region43: #{enhanced_rcnn_forward.5} parent=23 // pred_region
        %p341 = scmp.lt.s32.totalorder %s20, 1
        %s342 = scalar_select %p341, %s20, 1
        %p343 = scmp.lt.s32.totalorder %s21, 1
        %s344 = scalar_select %p343, %s21, 1
        %s345 = smul.addr %s342, 2
        %s346 = sadd.s32 %s344, %s345
        %s347 = scalar_lea.vmem %s6, %s346
      $region44: #{enhanced_rcnn_forward.5} parent=23 // pred_fallthru
        _
    $region24: #{enhanced_rcnn_forward.5} parent=5 // pred_fallthru
      _
    %p348 = scmp.le.s32.totalorder 1, %s13
    %p349 = scmp.lt.s32.totalorder %s13, 9
    %p350 = pnand %p348, %p349
    %p351 = pneg %p350
    // Predicated region
    $region45: #{enhanced_rcnn_forward.5} parent=5 // pred_check
      _
    $region46: #{enhanced_rcnn_forward.5} parent=5 // pred_check_branch
      %353 = sbr.rel (%p350) target = $region48
    $region47: #{enhanced_rcnn_forward.5} parent=5 // pred_region
      %s354 = ssub.s32 %s13, 1
      %s355 = smul.u32 %s25, 2
      %s356 = ssub.s32 1, %s355
      %s357 = smul.u32 %s24, %s356
      %s358 = sadd.s32 %s25, %s357
      %p359 = scmp.lt.s32.totalorder %s23, 1
      %s360 = scalar_select %p359, %s23, 1
      %p361 = scmp.lt.s32.totalorder %s358, 1
      %s362 = scalar_select %p361, %s358, 1
      %s363 = smul.addr %s360, 2
      %s364 = sadd.s32 %s362, %s363
      %s365 = smul.addr %s364, 8
      %s366 = scalar_lea.vmem %s0, %s365
      %p367 = pneg %p68
      %p368 = pneg %p65
      %p369 = pneg %p89
      %p370 = pneg %p86
      %p371 = pneg %p110
      %p372 = pneg %p107
      %p373 = scmp.lt.s32.totalorder %s23, 1
      %s374 = scalar_select %p373, %s23, 1
      %p375 = scmp.lt.s32.totalorder %s24, 1
      %s376 = scalar_select %p375, %s24, 1
      %s377 = smul.addr %s376, 4
      %s378 = smul.addr %s374, 8
      %s379 = sadd.s32 %s377, %s378
      %s380 = smul.addr %s379, 8
      %s381 = scalar_lea.vmem %s3, %s380
      %p382 = pneg %p138
      %p383 = pneg %p135
      %p384 = scmp.lt.s32.totalorder %s23, 1
      %s385 = scalar_select %p384, %s23, 1
      %p386 = scmp.lt.s32.totalorder %s24, 1
      %s387 = scalar_select %p386, %s24, 1
      %s388 = smul.addr %s385, 2
      %s389 = sadd.s32 %s387, %s388
      %s390 = scalar_lea.vmem %s4, %s389
      %p391 = pneg %p166
      %p392 = pneg %p163
      %p393 = scmp.lt.s32.totalorder %s23, 1
      %s394 = scalar_select %p393, %s23, 1
      %p395 = scmp.lt.s32.totalorder %s24, 1
      %s396 = scalar_select %p395, %s24, 1
      %s397 = smul.addr %s396, 2
      %s398 = smul.addr %s394, 4
      %s399 = sadd.s32 %s397, %s398
      %s400 = smul.addr %s399, 8
      %s401 = scalar_lea.vmem %s5, %s400
      %p402 = pneg %p194
      %p403 = pneg %p191
      %p404 = scmp.lt.s32.totalorder %s23, 1
      %s405 = scalar_select %p404, %s23, 1
      %p406 = scmp.lt.s32.totalorder %s24, 1
      %s407 = scalar_select %p406, %s24, 1
      %s408 = smul.addr %s405, 2
      %s409 = sadd.s32 %s407, %s408
      %s410 = scalar_lea.vmem %s6, %s409
      %p411 = pneg %p222
      %p412 = pneg %p219
      %p413 = pneg %p260
      %p414 = pneg %p257
      %s415 = smul.u32 %s25, 2
      %s416 = ssub.s32 1, %s415
      %s417 = smul.u32 %s24, %s416
      %s418 = sadd.s32 %s25, %s417
      %p419 = scmp.lt.s32.totalorder %s23, 1
      %s420 = scalar_select %p419, %s23, 1
      %p421 = scmp.lt.s32.totalorder %s24, 1
      %s422 = scalar_select %p421, %s24, 1
      %p423 = scmp.lt.s32.totalorder %s418, 1
      %s424 = scalar_select %p423, %s418, 1
      %s425 = smul.addr %s422, 2
      %s426 = sadd.s32 %s424, %s425
      %s427 = smul.addr %s420, 4
      %s428 = sadd.s32 %s426, %s427
      %s429 = smul.addr %s428, 8
      %s430 = scalar_lea.vmem %s7, %s429
      %s431 = smul.u32 %s25, 2
      %s432 = ssub.s32 1, %s431
      %s433 = smul.u32 %s24, %s432
      %s434 = sadd.s32 %s25, %s433
      %p435 = scmp.lt.s32.totalorder %s23, 1
      %s436 = scalar_select %p435, %s23, 1
      %p437 = scmp.lt.s32.totalorder %s434, 1
      %s438 = scalar_select %p437, %s434, 1
      %s439 = smul.addr %s436, 2
      %s440 = sadd.s32 %s438, %s439
      %s441 = smul.addr %s440, 8
      %s442 = scalar_lea.vmem %s0, %s441
      %s443 = smul.u32 %s25, 2
      %s444 = ssub.s32 1, %s443
      %s445 = smul.u32 %s24, %s444
      %s446 = sadd.s32 %s25, %s445
      %p447 = scmp.lt.s32.totalorder %s23, 1
      %s448 = scalar_select %p447, %s23, 1
      %p449 = scmp.lt.s32.totalorder %s24, 1
      %s450 = scalar_select %p449, %s24, 1
      %s451 = smul.addr %s450, 4
      %s452 = smul.addr %s448, 8
      %s453 = sadd.s32 %s451, %s452
      %s454 = smul.addr %s453, 8
      %s455 = scalar_lea.vmem %s3, %s454
      %p456 = scmp.lt.s32.totalorder %s23, 1
      %s457 = scalar_select %p456, %s23, 1
      %p458 = scmp.lt.s32.totalorder %s24, 1
      %s459 = scalar_select %p458, %s24, 1
      %s460 = smul.addr %s457, 2
      %s461 = sadd.s32 %s459, %s460
      %s462 = scalar_lea.vmem %s4, %s461
      %p463 = scmp.lt.s32.totalorder %s23, 1
      %s464 = scalar_select %p463, %s23, 1
      %p465 = scmp.lt.s32.totalorder %s24, 1
      %s466 = scalar_select %p465, %s24, 1
      %s467 = smul.addr %s466, 2
      %s468 = smul.addr %s464, 4
      %s469 = sadd.s32 %s467, %s468
      %s470 = smul.addr %s469, 8
      %s471 = scalar_lea.vmem %s5, %s470
      %p472 = scmp.lt.s32.totalorder %s23, 1
      %s473 = scalar_select %p472, %s23, 1
      %p474 = scmp.lt.s32.totalorder %s24, 1
      %s475 = scalar_select %p474, %s24, 1
      %s476 = smul.addr %s473, 2
      %s477 = sadd.s32 %s475, %s476
      %s478 = scalar_lea.vmem %s6, %s477
      %s479 = smul.u32 %s25, 2
      %s480 = ssub.s32 1, %s479
      %s481 = smul.u32 %s24, %s480
      %s482 = sadd.s32 %s25, %s481
      %p483 = scmp.lt.s32.totalorder %s23, 1
      %s484 = scalar_select %p483, %s23, 1
      %p485 = scmp.lt.s32.totalorder %s24, 1
      %s486 = scalar_select %p485, %s24, 1
      %p487 = scmp.lt.s32.totalorder %s482, 1
      %s488 = scalar_select %p487, %s482, 1
      %s489 = smul.addr %s486, 2
      %s490 = sadd.s32 %s488, %s489
      %s491 = smul.addr %s484, 4
      %s492 = sadd.s32 %s490, %s491
      %s493 = smul.addr %s492, 8
      %s494 = scalar_lea.vmem %s7, %s493
      %s495 = smul.u32 %s25, 2
      %s496 = ssub.s32 1, %s495
      %s497 = smul.u32 %s24, %s496
      %s498 = sadd.s32 %s25, %s497
      %p499 = scmp.eq.s32.totalorder %s25, 0
      // Predicated region
      $region49: #{enhanced_rcnn_forward.5} parent=47 // pred_check
        %p500 = pneg %p499
      $region50: #{enhanced_rcnn_forward.5} parent=47 // pred_check_branch
        %502 = sbr.rel (%p500) target = $region52
      $region51: #{enhanced_rcnn_forward.5} parent=47 // pred_region
        %vm503 = vcmask 130048
        %504 = vst.msk [vmem:[#allocation2] sm:$0xff] %vm503, 0.0
      $region52: #{enhanced_rcnn_forward.5} parent=47 // pred_fallthru
        _
      %v505 = vld [vmem:[%s442] sm:$0xff]
      %v506 = vld [vmem:[%s1] sm:$0xff]
      %508 = vset.pattern.permute.xlu0 0
      %509 = vperm.xlu0 %508, %v506
      %v510 = vpop.permute.xlu0 %509
      %v512 = vmul.f32 %v505, %v510
      %v513 = vld [vmem:[%s2] sm:$0xff]
      %515 = vset.pattern.permute.xlu0 0
      %516 = vperm.xlu0 %515, %v513
      %v517 = vpop.permute.xlu0 %516
      %v519 = vadd.f32 %v512, %v517
      %v520 = vld [vmem:[%s455] sm:$0xff]
      %v521 = vld [vmem:[%s455 + $0x8] sm:$0xff]
      %v522 = vld [vmem:[%s455 + $0x10] sm:$0xff]
      %v523 = vld [vmem:[%s455 + $0x18] sm:$0xff]
      %v524 = vld [vmem:[%s462] sm:$0x1]
      %v526 = vlaneseq
      %v527 = vshrl.u32 %v526, 7
      %v528 = vsub.s32 0, %v527
      %v529 = vrot.slane %v524, %v528
      %vm531 = vcmask 261120
      %v533 = vsel %vm531, %v519, 0
      %535 = vmatprep.subr.mxu0 0.0
      %536 = vmatpush1.msra.mxu0 %v520
      %537 = vmatprep.subr.mxu0 0.0
      %538 = vmatpush1.msra.mxu0 %v521
      %539 = vmatprep.subr.mxu0 0.0
      %540 = vmatpush1.msra.mxu0 %v522
      %541 = vmatprep.subr.mxu0 0.0
      %542 = vmatpush1.msra.mxu0 %v523
      %543 = vmatprep.subr.mxu0 0.0
      %544 = vmatpush1.msra.mxu0 0.0
      %545 = vmatprep.subr.mxu0 0.0
      %546 = vmatpush1.msra.mxu0 0.0
      %547 = vmatprep.subr.mxu0 0.0
      %548 = vmatpush1.msra.mxu0 0.0
      %549 = vmatprep.subr.mxu0 0.0
      %550 = vmatpush1.msra.mxu0 0.0
      %551 = vmatprep.subr.mxu0 0.0
      %552 = vmatpush1.msra.mxu0 0.0
      %553 = vmatprep.subr.mxu0 0.0
      %554 = vmatpush1.msra.mxu0 0.0
      %555 = vmatprep.subr.mxu0 0.0
      %556 = vmatpush1.msra.mxu0 0.0
      %557 = vmatprep.subr.mxu0 0.0
      %558 = vmatpush1.msra.mxu0 0.0
      %559 = vmatprep.subr.mxu0 0.0
      %560 = vmatpush1.msra.mxu0 0.0
      %561 = vmatprep.subr.mxu0 0.0
      %562 = vmatpush1.msra.mxu0 0.0
      %563 = vmatprep.subr.mxu0 0.0
      %564 = vmatpush1.msra.mxu0 0.0
      %565 = vmatprep.subr.mxu0 0.0
      %566 = vmatpush1.msra.mxu0 0.0
      %567 = vmatprep.subr.mxu0 0.0
      %568 = vmatpush1.msra.mxu0 0.0
      %569 = vmatprep.subr.mxu0 0.0
      %570 = vmatpush1.msra.mxu0 0.0
      %571 = vmatprep.subr.mxu0 0.0
      %572 = vmatpush1.msra.mxu0 0.0
      %573 = vmatprep.subr.mxu0 0.0
      %574 = vmatpush1.msra.mxu0 0.0
      %575 = vmatprep.subr.mxu0 0.0
      %576 = vmatpush1.msra.mxu0 0.0
      %577 = vmatprep.subr.mxu0 0.0
      %578 = vmatpush1.msra.mxu0 0.0
      %579 = vmatprep.subr.mxu0 0.0
      %580 = vmatpush1.msra.mxu0 0.0
      %581 = vmatprep.subr.mxu0 0.0
      %582 = vmatpush1.msra.mxu0 0.0
      %583 = vmatprep.subr.mxu0 0.0
      %584 = vmatpush1.msra.mxu0 0.0
      %585 = vmatprep.subr.mxu0 0.0
      %586 = vmatpush1.msra.mxu0 0.0
      %587 = vmatprep.subr.mxu0 0.0
      %588 = vmatpush1.msra.mxu0 0.0
      %589 = vmatprep.subr.mxu0 0.0
      %590 = vmatpush1.msra.mxu0 0.0
      %591 = vmatprep.subr.mxu0 0.0
      %592 = vmatpush1.msra.mxu0 0.0
      %593 = vmatprep.subr.mxu0 0.0
      %594 = vmatpush1.msra.mxu0 0.0
      %595 = vmatprep.subr.mxu0 0.0
      %596 = vmatpush1.msra.mxu0 0.0
      %597 = vmatprep.subr.mxu0 0.0
      %598 = vmatpush1.msra.mxu0 0.0
      %599 = vmatprep.mubr.f32.mxu0 0.0
      %600 = vmatmul.mubr.f32.gmra.mrb[0].mxu0 %v533
      %v601 = vpop.f32.mrb[0].mxu0
      %v602 = vadd.f32 %v529, %v601
      %v603 = vpop.f32.mrb[0].mxu0
      %604 = vdwg.mxu0
      %v605 = vld [vmem:[#allocation2] sm:$0xff]
      %v606 = vld [vmem:[%s471] sm:$0xff]
      %v607 = vld [vmem:[%s471 + $0x8] sm:$0xff]
      %v608 = vld [vmem:[%s478] sm:$0x1]
      %v610 = vlaneseq
      %v611 = vshrl.u32 %v610, 7
      %v612 = vsub.s32 0, %v611
      %v613 = vrot.slane %v608, %v612
      %vm615 = vcmask 130048
      %v617 = vsel %vm615, %v605, 0
      %619 = vmatprep.subr.mxu0 0.0
      %620 = vmatpush1.msra.mxu0 %v606
      %621 = vmatprep.subr.mxu0 0.0
      %622 = vmatpush1.msra.mxu0 %v607
      %623 = vmatprep.subr.mxu0 0.0
      %624 = vmatpush1.msra.mxu0 0.0
      %625 = vmatprep.subr.mxu0 0.0
      %626 = vmatpush1.msra.mxu0 0.0
      %627 = vmatprep.subr.mxu0 0.0
      %628 = vmatpush1.msra.mxu0 0.0
      %629 = vmatprep.subr.mxu0 0.0
      %630 = vmatpush1.msra.mxu0 0.0
      %631 = vmatprep.subr.mxu0 0.0
      %632 = vmatpush1.msra.mxu0 0.0
      %633 = vmatprep.subr.mxu0 0.0
      %634 = vmatpush1.msra.mxu0 0.0
      %635 = vmatprep.subr.mxu0 0.0
      %636 = vmatpush1.msra.mxu0 0.0
      %637 = vmatprep.subr.mxu0 0.0
      %638 = vmatpush1.msra.mxu0 0.0
      %639 = vmatprep.subr.mxu0 0.0
      %640 = vmatpush1.msra.mxu0 0.0
      %641 = vmatprep.subr.mxu0 0.0
      %642 = vmatpush1.msra.mxu0 0.0
      %643 = vmatprep.subr.mxu0 0.0
      %644 = vmatpush1.msra.mxu0 0.0
      %645 = vmatprep.subr.mxu0 0.0
      %646 = vmatpush1.msra.mxu0 0.0
      %647 = vmatprep.subr.mxu0 0.0
      %648 = vmatpush1.msra.mxu0 0.0
      %649 = vmatprep.subr.mxu0 0.0
      %650 = vmatpush1.msra.mxu0 0.0
      %651 = vmatprep.subr.mxu0 0.0
      %652 = vmatpush1.msra.mxu0 0.0
      %653 = vmatprep.subr.mxu0 0.0
      %654 = vmatpush1.msra.mxu0 0.0
      %655 = vmatprep.subr.mxu0 0.0
      %656 = vmatpush1.msra.mxu0 0.0
      %657 = vmatprep.subr.mxu0 0.0
      %658 = vmatpush1.msra.mxu0 0.0
      %659 = vmatprep.subr.mxu0 0.0
      %660 = vmatpush1.msra.mxu0 0.0
      %661 = vmatprep.subr.mxu0 0.0
      %662 = vmatpush1.msra.mxu0 0.0
      %663 = vmatprep.subr.mxu0 0.0
      %664 = vmatpush1.msra.mxu0 0.0
      %665 = vmatprep.subr.mxu0 0.0
      %666 = vmatpush1.msra.mxu0 0.0
      %667 = vmatprep.subr.mxu0 0.0
      %668 = vmatpush1.msra.mxu0 0.0
      %669 = vmatprep.subr.mxu0 0.0
      %670 = vmatpush1.msra.mxu0 0.0
      %671 = vmatprep.subr.mxu0 0.0
      %672 = vmatpush1.msra.mxu0 0.0
      %673 = vmatprep.subr.mxu0 0.0
      %674 = vmatpush1.msra.mxu0 0.0
      %675 = vmatprep.subr.mxu0 0.0
      %676 = vmatpush1.msra.mxu0 0.0
      %677 = vmatprep.subr.mxu0 0.0
      %678 = vmatpush1.msra.mxu0 0.0
      %679 = vmatprep.subr.mxu0 0.0
      %680 = vmatpush1.msra.mxu0 0.0
      %681 = vmatprep.subr.mxu0 0.0
      %682 = vmatpush1.msra.mxu0 0.0
      %683 = vmatprep.mubr.f32.mxu0 0.0
      %684 = vmatmul.mubr.f32.gmra.mrb[0].mxu0 %v617
      %v685 = vpop.f32.mrb[0].mxu0
      %v686 = vadd.f32 %v613, %v685
      %v687 = vpop.f32.mrb[0].mxu0
      %688 = vdwg.mxu0
      %v689 = vadd.f32 %v602, %v686
      %v690 = vxor.u32 %v689, 2147483648
      %v691 = vmul.f32 %v690, 1.442695
      %v692 = vpow.pop %v691
      %v693 = vadd.f32 %v692, 1.0
      %v694 = vrcp.pop %v693
      %v695 = vmul.f32 1.0, %v694
      %697 = vrot.lane.b32.xlu0 %v686, 96
      %v698 = vpop.permute.xlu0 %697
      %v700 = vmul.f32 %v695, %v698
      %702 = vrot.lane.b32.xlu0 %v700, 32
      %v703 = vpop.permute.xlu0 %702
      %v705 = vadd.f32 %v602, %v703
      %v706 = vtanh.pop %v705
      %v707 = vsub.f32 1.0, %v695
      %709 = vrot.lane.b32.xlu0 %v706, 112
      %v710 = vpop.permute.xlu0 %709
      %v712 = vmul.f32 %v707, %v710
      %713 = vrot.lane.b32.xlu0 %v605, 16
      %v714 = vpop.permute.xlu0 %713
      %v716 = vmul.f32 %v695, %v714
      %v717 = vadd.f32 %v712, %v716
      %719 = vrot.lane.b32.xlu0 %v717, 112
      %v720 = vpop.permute.xlu0 %719
      %722 = vst.msk [vmem:[#allocation2] sm:$0xff] %vm615, %v720
      %723 = vst.msk [vmem:[%s494] sm:$0xff] %vm615, %v720
      %s724 = smul.u32 %s25, 2
      %s725 = ssub.s32 1, %s724
      %s726 = smul.u32 %s24, %s725
      %s727 = sadd.s32 %s25, %s726
      %p728 = scmp.lt.s32.totalorder %s23, 1
      %s729 = scalar_select %p728, %s23, 1
      %p730 = scmp.lt.s32.totalorder %s24, 1
      %s731 = scalar_select %p730, %s24, 1
      %p732 = scmp.lt.s32.totalorder %s727, 1
      %s733 = scalar_select %p732, %s727, 1
      %s734 = smul.addr %s731, 2
      %s735 = sadd.s32 %s733, %s734
      %s736 = smul.addr %s729, 4
      %s737 = sadd.s32 %s735, %s736
      %s738 = smul.addr %s737, 8
      %s739 = scalar_lea.vmem %s7, %s738
      // Predicated region
      $region53: #{enhanced_rcnn_forward.5} parent=47 // pred_check
        %p740 = pneg %p257
      $region54: #{enhanced_rcnn_forward.5} parent=47 // pred_check_branch
        %742 = sbr.rel (%p740) target = $region56
      $region55: #{enhanced_rcnn_forward.5} parent=47 // pred_region
        %s743 = smul.u32 %s25, 2
        %s744 = ssub.s32 1, %s743
        %s745 = smul.u32 %s24, %s744
        %s746 = sadd.s32 %s25, %s745
      $region56: #{enhanced_rcnn_forward.5} parent=47 // pred_fallthru
        _
    $region48: #{enhanced_rcnn_forward.5} parent=5 // pred_fallthru
      _
    %p747 = scmp.le.s32.totalorder 2, %s13
    // Predicated region
    $region57: #{enhanced_rcnn_forward.5} parent=5 // pred_check
      %p748 = pneg %p747
    $region58: #{enhanced_rcnn_forward.5} parent=5 // pred_check_branch
      %750 = sbr.rel (%p748) target = $region60
    $region59: #{enhanced_rcnn_forward.5} parent=5 // pred_region
      %s751 = ssub.s32 %s13, 2
      // Predicated region
      $region61: #{enhanced_rcnn_forward.5} parent=59 // pred_check
        %p752 = pneg %p263
      $region62: #{enhanced_rcnn_forward.5} parent=59 // pred_check_branch
        %754 = sbr.rel (%p752) target = $region64
      $region63: #{enhanced_rcnn_forward.5} parent=59 // pred_region
        %s755 = smul.u32 %s28, 2
        %s756 = ssub.s32 1, %s755
        %s757 = smul.u32 %s27, %s756
        %s758 = sadd.s32 %s28, %s757
        %p759 = scmp.lt.s32.totalorder %s26, 1
        %s760 = scalar_select %p759, %s26, 1
        %p761 = scmp.lt.s32.totalorder %s27, 1
        %s762 = scalar_select %p761, %s27, 1
        %p763 = scmp.lt.s32.totalorder %s758, 1
        %s764 = scalar_select %p763, %s758, 1
        %s765 = smul.addr %s762, 2
        %s766 = sadd.s32 %s764, %s765
        %s767 = smul.addr %s760, 4
        %s768 = sadd.s32 %s766, %s767
        %s769 = smul.addr %s768, 8
        %s770 = scalar_lea.vmem %s7, %s769
      $region64: #{enhanced_rcnn_forward.5} parent=59 // pred_fallthru
        _
    $region60: #{enhanced_rcnn_forward.5} parent=5 // pred_fallthru
      _
  $region6: #{enhanced_rcnn_forward.5} parent=0 // loop_footer
    %s17 = sadd.s32 1, %s13
  $region7: #{enhanced_rcnn_forward.5} parent=0 // loop_footer_branch
    %12 = sbr.rel target = $region3
  $region8: #{enhanced_rcnn_forward.5} parent=0 // loop_exit
    _

// kernel: squeeze.14
$region0: #{squeeze.14}
  %s0 = inlined_call_operand.vmem [shape: f32[1,2,6,8], index: 0, kind: input, shape index: {}]
  %s1 = inlined_call_operand.vmem [shape: f32[2,48], index: 1, kind: output, shape index: {}]
  $region1: #{squeeze.14} parent=0
    #allocation0 [shape = 'u8[4096]{0}', space=vmem, size = 0x1000, scoped, tag = 'scoped mem for output reshape']
    %s2 = smov 3
    %v3 = vld [vmem:[%s0] ss:$8 sm:%s2]
    %vm4 = vcmask 64512
    %5 = vst.msk [vmem:[#allocation0] sm:$0x3] %vm4, %v3
    %s6 = scalar_lea.vmem %s0, 5
    %s7 = smov 3
    %v8 = vld [vmem:[%s6] ss:$8 sm:%s7]
    %9 = vrot.lane.b32.xlu0 %v8, 40
    %v10 = vpop.permute.xlu0 %9
    %vm11 = vcmask 392512
    %12 = vst.msk [vmem:[#allocation0] sm:$0x3] %vm11, %v10
    %s13 = scalar_lea.vmem %s0, 4
    %s14 = smov 3
    %v15 = vld [vmem:[%s13] ss:$8 sm:%s14]
    %16 = vrot.lane.b32.xlu0 %v15, 32
    %v17 = vpop.permute.xlu0 %16
    %vm18 = vcmask 326912
    %19 = vst.msk [vmem:[#allocation0] sm:$0x3] %vm18, %v17
    %s20 = scalar_lea.vmem %s0, 3
    %s21 = smov 3
    %v22 = vld [vmem:[%s20] ss:$8 sm:%s21]
    %23 = vrot.lane.b32.xlu0 %v22, 24
    %v24 = vpop.permute.xlu0 %23
    %vm25 = vcmask 261312
    %26 = vst.msk [vmem:[#allocation0] sm:$0x3] %vm25, %v24
    %s27 = scalar_lea.vmem %s0, 2
    %s28 = smov 3
    %v29 = vld [vmem:[%s27] ss:$8 sm:%s28]
    %30 = vrot.lane.b32.xlu0 %v29, 16
    %v31 = vpop.permute.xlu0 %30
    %vm32 = vcmask 195712
    %33 = vst.msk [vmem:[#allocation0] sm:$0x3] %vm32, %v31
    %s34 = scalar_lea.vmem %s0, 1
    %s35 = smov 3
    %v36 = vld [vmem:[%s34] ss:$8 sm:%s35]
    %37 = vrot.lane.b32.xlu0 %v36, 8
    %v38 = vpop.permute.xlu0 %37
    %vm39 = vcmask 130112
    %40 = vst.msk [vmem:[#allocation0] sm:$0x3] %vm39, %v38
    %s42 = sshllo.u32 0, 2
    %v44 = vld [vmem:[#allocation0] sm:%s42]
    %s45 = sshllo.u32 0, 2
    %46 = vst [vmem:[%s1] sm:%s45] %v44

// kernel: enhanced_rcnn_forward.7
$region0: #{enhanced_rcnn_forward.7}
  #allocation0 [shape = 'u32[]', space=smem, size = 0x4, offset = 0x4, fixed_abs, tag = 'smem constant byte address 0x4 - core index']
  #allocation1 [shape = 'u32[144,128]{1,0:T(1,128)}', space=vmem, size = 0x12000, scoped, tag = 'internal scratch']
  %s0 = inlined_call_operand.vmem [shape: f32[2,8,32], index: 0, kind: input, shape index: {}]
  %s1 = inlined_call_operand.vmem [shape: f32[2,8,32], index: 1, kind: input, shape index: {}]
  %s2 = inlined_call_operand.vmem [shape: f32[2,1,128], index: 2, kind: output, shape index: {}]
  %s3 = sld [smem:[#allocation0]]
  $region41: #{enhanced_rcnn_forward.7} parent=0
    _
  %s5 = ssub.s32 1, %s3
  %s6 = scalar_select 0, %s5, %s3
  loop: start=0, step=1, limit=4
  $region2: #{enhanced_rcnn_forward.7} parent=0 // loop_pre_header
    _
  $region3: #{enhanced_rcnn_forward.7} parent=0 // loop_header
    %s8 = sphi 0, %s12
    %p9 = scmp.ge.s32.totalorder %s8, 4
    %s18 = sphi 0, %s20
    %s21 = sphi 0, %s18
    %s22 = sphi 0, %s21
    %s38 = sphi 0, %s22
    %s44 = sphi 0, %s46
    %s47 = sphi 0, %s44
    %s48 = sphi 0, %s47
    %s64 = sphi 0, %s48
    %s70 = sphi 0, %s72
    %s73 = sphi 0, %s70
    %s74 = sphi 0, %s73
    %s90 = sphi 0, %s74
  $region4: #{enhanced_rcnn_forward.7} parent=0 // loop_header_branch
    %11 = sbr.rel (%p9) target = $region8
  $region5: #{enhanced_rcnn_forward.7} parent=0 // loop_body
    %s13 = ssub.s32 %s8, 1
    %s14 = ssub.s32 %s8, 2
    %s15 = sadd.s32 %s8, 1
    %s16 = ssub.s32 %s8, %s15
    %p17 = scmp.eq.s32.totalorder %s16, 0
    %s19 = sadd.s32 %s18, 1
    %s20 = scalar_select %p17, %s18, %s19
    %p23 = pneg %p17
    %p24 = scmp.eq.s32.totalorder %s8, 1
    %p25 = por %p23, %p24
    %p26 = scmp.ne.s32.totalorder %s18, %s21
    %p27 = scmp.eq.s32.totalorder %s8, 0
    %p28 = por %p26, %p27
    %p29 = scmp.ne.s32.totalorder %s18, %s21
    %p30 = scmp.eq.s32.totalorder %s13, 1
    %p31 = por %p29, %p30
    %p32 = scmp.ne.s32.totalorder %s21, %s22
    %p33 = scmp.eq.s32.totalorder %s13, 0
    %p34 = por %p32, %p33
    %p35 = scmp.ne.s32.totalorder %s21, %s22
    %p36 = scmp.eq.s32.totalorder %s14, 1
    %p37 = por %p35, %p36
    %p39 = scmp.ne.s32.totalorder %s22, %s38
    %p40 = scmp.eq.s32.totalorder %s14, 0
    %p41 = por %p39, %p40
    %s42 = ssub.s32 %s8, %s15
    %p43 = scmp.eq.s32.totalorder %s42, 0
    %s45 = sadd.s32 %s44, 1
    %s46 = scalar_select %p43, %s44, %s45
    %p49 = pneg %p43
    %p50 = scmp.eq.s32.totalorder %s8, 1
    %p51 = por %p49, %p50
    %p52 = scmp.ne.s32.totalorder %s44, %s47
    %p53 = scmp.eq.s32.totalorder %s8, 0
    %p54 = por %p52, %p53
    %p55 = scmp.ne.s32.totalorder %s44, %s47
    %p56 = scmp.eq.s32.totalorder %s13, 1
    %p57 = por %p55, %p56
    %p58 = scmp.ne.s32.totalorder %s47, %s48
    %p59 = scmp.eq.s32.totalorder %s13, 0
    %p60 = por %p58, %p59
    %p61 = scmp.ne.s32.totalorder %s47, %s48
    %p62 = scmp.eq.s32.totalorder %s14, 1
    %p63 = por %p61, %p62
    %p65 = scmp.ne.s32.totalorder %s48, %s64
    %p66 = scmp.eq.s32.totalorder %s14, 0
    %p67 = por %p65, %p66
    %s68 = ssub.s32 %s8, %s15
    %p69 = scmp.eq.s32.totalorder %s68, 0
    %s71 = sadd.s32 %s70, 1
    %s72 = scalar_select %p69, %s70, %s71
    %p75 = pneg %p69
    %p76 = scmp.eq.s32.totalorder %s8, 1
    %p77 = por %p75, %p76
    %p78 = scmp.ne.s32.totalorder %s70, %s73
    %p79 = scmp.eq.s32.totalorder %s8, 0
    %p80 = por %p78, %p79
    %p81 = scmp.ne.s32.totalorder %s70, %s73
    %p82 = scmp.eq.s32.totalorder %s13, 1
    %p83 = por %p81, %p82
    %p84 = scmp.ne.s32.totalorder %s73, %s74
    %p85 = scmp.eq.s32.totalorder %s13, 0
    %p86 = por %p84, %p85
    %p87 = scmp.ne.s32.totalorder %s73, %s74
    %p88 = scmp.eq.s32.totalorder %s14, 1
    %p89 = por %p87, %p88
    %p91 = scmp.ne.s32.totalorder %s74, %s90
    %p92 = scmp.eq.s32.totalorder %s14, 0
    %p93 = por %p91, %p92
    %p94 = scmp.le.s32.totalorder 1, %s8
    %p95 = scmp.lt.s32.totalorder %s8, 3
    %p96 = pnand %p94, %p95
    %p97 = pneg %p96
    // Predicated region
    $region9: #{enhanced_rcnn_forward.7} parent=5 // pred_check
      _
    $region10: #{enhanced_rcnn_forward.7} parent=5 // pred_check_branch
      %99 = sbr.rel (%p96) target = $region12
    $region11: #{enhanced_rcnn_forward.7} parent=5 // pred_region
      %s100 = ssub.s32 %s8, 1
    $region12: #{enhanced_rcnn_forward.7} parent=5 // pred_fallthru
      _
    %p101 = scmp.lt.s32.totalorder %s8, 2
    // Predicated region
    $region13: #{enhanced_rcnn_forward.7} parent=5 // pred_check
      %p102 = pneg %p101
    $region14: #{enhanced_rcnn_forward.7} parent=5 // pred_check_branch
      %104 = sbr.rel (%p102) target = $region16
    $region15: #{enhanced_rcnn_forward.7} parent=5 // pred_region
      // Predicated region
      $region17: #{enhanced_rcnn_forward.7} parent=15 // pred_check
        %p105 = pneg %p28
      $region18: #{enhanced_rcnn_forward.7} parent=15 // pred_check_branch
        %107 = sbr.rel (%p105) target = $region20
      $region19: #{enhanced_rcnn_forward.7} parent=15 // pred_region
        %p108 = scmp.lt.s32.totalorder %s8, 1
        %s109 = scalar_select %p108, %s8, 1
        %s110 = smul.addr %s109, 8
        %s111 = scalar_lea.vmem %s0, %s110
      $region20: #{enhanced_rcnn_forward.7} parent=15 // pred_fallthru
        _
      // Predicated region
      $region21: #{enhanced_rcnn_forward.7} parent=15 // pred_check
        %p112 = pneg %p54
      $region22: #{enhanced_rcnn_forward.7} parent=15 // pred_check_branch
        %114 = sbr.rel (%p112) target = $region24
      $region23: #{enhanced_rcnn_forward.7} parent=15 // pred_region
        %p115 = scmp.lt.s32.totalorder %s8, 1
        %s116 = scalar_select %p115, %s8, 1
        %s117 = smul.addr %s116, 8
        %s118 = scalar_lea.vmem %s1, %s117
      $region24: #{enhanced_rcnn_forward.7} parent=15 // pred_fallthru
        _
    $region16: #{enhanced_rcnn_forward.7} parent=5 // pred_fallthru
      _
    %p119 = scmp.le.s32.totalorder 1, %s8
    %p120 = scmp.lt.s32.totalorder %s8, 3
    %p121 = pnand %p119, %p120
    %p122 = pneg %p121
    // Predicated region
    $region25: #{enhanced_rcnn_forward.7} parent=5 // pred_check
      _
    $region26: #{enhanced_rcnn_forward.7} parent=5 // pred_check_branch
      %124 = sbr.rel (%p121) target = $region28
    $region27: #{enhanced_rcnn_forward.7} parent=5 // pred_region
      %s125 = ssub.s32 %s8, 1
      %p126 = scmp.lt.s32.totalorder %s13, 1
      %s127 = scalar_select %p126, %s13, 1
      %s128 = smul.addr %s127, 8
      %s129 = scalar_lea.vmem %s0, %s128
      %p130 = pneg %p34
      %p131 = pneg %p31
      %p132 = scmp.lt.s32.totalorder %s13, 1
      %s133 = scalar_select %p132, %s13, 1
      %s134 = smul.addr %s133, 8
      %s135 = scalar_lea.vmem %s1, %s134
      %p136 = pneg %p60
      %p137 = pneg %p57
      %p138 = pneg %p86
      %p139 = pneg %p83
      %p140 = scmp.lt.s32.totalorder %s13, 1
      %s141 = scalar_select %p140, %s13, 1
      %s142 = scalar_lea.vmem %s2, %s141
      %p143 = scmp.lt.s32.totalorder %s13, 1
      %s144 = scalar_select %p143, %s13, 1
      %s145 = smul.addr %s144, 8
      %s146 = scalar_lea.vmem %s0, %s145
      %p147 = scmp.lt.s32.totalorder %s13, 1
      %s148 = scalar_select %p147, %s13, 1
      %s149 = smul.addr %s148, 8
      %s150 = scalar_lea.vmem %s1, %s149
      %p151 = scmp.lt.s32.totalorder %s13, 1
      %s152 = scalar_select %p151, %s13, 1
      %s153 = scalar_lea.vmem %s2, %s152
      %v154 = vld [vmem:[%s146] sm:$0xff]
      %v155 = vld [vmem:[%s150] sm:$0xff]
      %vm156 = vcmask 261120
      %v158 = vsel %vm156, %v154, 0
      %v161 = vsel %vm156, %v155, 0
      %163 = vmatprep.subr.mxu0 0.0
      %164 = vmatpush1.xpose.msra.mxu0 %v161
      %165 = vmatprep.subr.mxu0 0.0
      %166 = vmatpush1.xpose.msra.mxu0 0.0
      %167 = vmatprep.subr.mxu0 0.0
      %168 = vmatpush1.xpose.msra.mxu0 0.0
      %169 = vmatprep.subr.mxu0 0.0
      %170 = vmatpush1.xpose.msra.mxu0 0.0
      %171 = vmatprep.subr.mxu0 0.0
      %172 = vmatpush1.xpose.msra.mxu0 0.0
      %173 = vmatprep.subr.mxu0 0.0
      %174 = vmatpush1.xpose.msra.mxu0 0.0
      %175 = vmatprep.subr.mxu0 0.0
      %176 = vmatpush1.xpose.msra.mxu0 0.0
      %177 = vmatprep.subr.mxu0 0.0
      %178 = vmatpush1.xpose.msra.mxu0 0.0
      %179 = vmatprep.subr.mxu0 0.0
      %180 = vmatpush1.xpose.msra.mxu0 0.0
      %181 = vmatprep.subr.mxu0 0.0
      %182 = vmatpush1.xpose.msra.mxu0 0.0
      %183 = vmatprep.subr.mxu0 0.0
      %184 = vmatpush1.xpose.msra.mxu0 0.0
      %185 = vmatprep.subr.mxu0 0.0
      %186 = vmatpush1.xpose.msra.mxu0 0.0
      %187 = vmatprep.subr.mxu0 0.0
      %188 = vmatpush1.xpose.msra.mxu0 0.0
      %189 = vmatprep.subr.mxu0 0.0
      %190 = vmatpush1.xpose.msra.mxu0 0.0
      %191 = vmatprep.subr.mxu0 0.0
      %192 = vmatpush1.xpose.msra.mxu0 0.0
      %193 = vmatprep.subr.mxu0 0.0
      %194 = vmatpush1.xpose.msra.mxu0 0.0
      %195 = vmatprep.subr.mxu0 0.0
      %196 = vmatpush1.xpose.msra.mxu0 0.0
      %197 = vmatprep.subr.mxu0 0.0
      %198 = vmatpush1.xpose.msra.mxu0 0.0
      %199 = vmatprep.subr.mxu0 0.0
      %200 = vmatpush1.xpose.msra.mxu0 0.0
      %201 = vmatprep.subr.mxu0 0.0
      %202 = vmatpush1.xpose.msra.mxu0 0.0
      %203 = vmatprep.subr.mxu0 0.0
      %204 = vmatpush1.xpose.msra.mxu0 0.0
      %205 = vmatprep.subr.mxu0 0.0
      %206 = vmatpush1.xpose.msra.mxu0 0.0
      %207 = vmatprep.subr.mxu0 0.0
      %208 = vmatpush1.xpose.msra.mxu0 0.0
      %209 = vmatprep.subr.mxu0 0.0
      %210 = vmatpush1.xpose.msra.mxu0 0.0
      %211 = vmatprep.subr.mxu0 0.0
      %212 = vmatpush1.xpose.msra.mxu0 0.0
      %213 = vmatprep.subr.mxu0 0.0
      %214 = vmatpush1.xpose.msra.mxu0 0.0
      %215 = vmatprep.subr.mxu0 0.0
      %216 = vmatpush1.xpose.msra.mxu0 0.0
      %217 = vmatprep.subr.mxu0 0.0
      %218 = vmatpush1.xpose.msra.mxu0 0.0
      %219 = vmatprep.subr.mxu0 0.0
      %220 = vmatpush1.xpose.msra.mxu0 0.0
      %221 = vmatprep.subr.mxu0 0.0
      %222 = vmatpush1.xpose.msra.mxu0 0.0
      %223 = vmatprep.subr.mxu0 0.0
      %224 = vmatpush1.xpose.msra.mxu0 0.0
      %225 = vmatprep.subr.mxu0 0.0
      %226 = vmatpush1.xpose.msra.mxu0 0.0
      %227 = vmatprep.mubr.f32.mxu0 0.0
      %228 = vmatmul.mubr.f32.gmra.mrb[0].mxu0 %v158
      %v229 = vpop.f32.mrb[0].mxu0
      %v230 = vadd.f32 0.0, %v229
      %v231 = vpop.f32.mrb[0].mxu0
      %232 = vdwg.mxu0
      %vm233 = vcmask 64512
      %v234 = vsel %vm233, %v230, -inf
      %v235 = vrot.slane %v234, 4
      %v236 = vmax.f32 %v234, %v235
      %v237 = vrot.slane %v236, 2
      %v238 = vmax.f32 %v236, %v237
      %v239 = vrot.slane %v238, 1
      %v240 = vmax.f32 %v238, %v239
      %v241 = vsub.f32 %v230, %v240
      %v242 = vmul.f32 %v241, 1.442695
      %v243 = vpow.pop %v242
      %v244 = vsel %vm233, %v243, 0.0
      %v245 = vrot.slane %v244, 4
      %v246 = vadd.f32 %v244, %v245
      %v247 = vrot.slane %v246, 2
      %v248 = vadd.f32 %v246, %v247
      %v249 = vrot.slane %v248, 1
      %v250 = vadd.f32 %v248, %v249
      %v251 = vrcp.pop %v250
      %v252 = vmul.f32 %v243, %v251
      %253 = vmax.xlane.f32.xlu0 %v234
      %v254 = vpop.xlane.xlu0 %253
      %v255 = vsub.f32 %v230, %v254
      %v256 = vmul.f32 %v255, 1.442695
      %v257 = vpow.pop %v256
      %v258 = vsel %vm233, %v257, 0.0
      %259 = vadd.xlane.f32.xlu0 %v258
      %v260 = vpop.xlane.xlu0 %259
      %v261 = vrcp.pop %v260
      %v262 = vmul.f32 %v257, %v261
      %263 = vxpose.xlu0.b32.start [1/16] %v262, 128
      %264 = vxpose.xlu0.b32.cont [2/16] 0.0, 128
      %265 = vxpose.xlu0.b32.cont [3/16] 0.0, 128
      %266 = vxpose.xlu0.b32.cont [4/16] 0.0, 128
      %267 = vxpose.xlu0.b32.cont [5/16] 0.0, 128
      %268 = vxpose.xlu0.b32.cont [6/16] 0.0, 128
      %269 = vxpose.xlu0.b32.cont [7/16] 0.0, 128
      %270 = vxpose.xlu0.b32.cont [8/16] 0.0, 128
      %271 = vxpose.xlu0.b32.cont [9/16] 0.0, 128
      %272 = vxpose.xlu0.b32.cont [10/16] 0.0, 128
      %273 = vxpose.xlu0.b32.cont [11/16] 0.0, 128
      %274 = vxpose.xlu0.b32.cont [12/16] 0.0, 128
      %275 = vxpose.xlu0.b32.cont [13/16] 0.0, 128
      %276 = vxpose.xlu0.b32.cont [14/16] 0.0, 128
      %277 = vxpose.xlu0.b32.cont [15/16] 0.0, 128
      %278 = vxpose.xlu0.b32.end [16/16] 0.0, 128
      %v279 = vpop.trf.xlu0
      %v280 = vpop.trf.xlu0
      %v281 = vpop.trf.xlu0
      %v282 = vpop.trf.xlu0
      %v283 = vpop.trf.xlu0
      %v284 = vpop.trf.xlu0
      %v285 = vpop.trf.xlu0
      %v286 = vpop.trf.xlu0
      %v287 = vpop.trf.xlu0
      %v288 = vpop.trf.xlu0
      %v289 = vpop.trf.xlu0
      %v290 = vpop.trf.xlu0
      %v291 = vpop.trf.xlu0
      %v292 = vpop.trf.xlu0
      %v293 = vpop.trf.xlu0
      %v294 = vpop.trf.xlu0
      %v296 = vsel %vm233, %v252, 0
      %298 = vmatprep.subr.mxu0 0.0
      %299 = vmatpush1.msra.mxu0 %v154
      %300 = vmatprep.subr.mxu0 0.0
      %301 = vmatpush1.msra.mxu0 0.0
      %302 = vmatprep.subr.mxu0 0.0
      %303 = vmatpush1.msra.mxu0 0.0
      %304 = vmatprep.subr.mxu0 0.0
      %305 = vmatpush1.msra.mxu0 0.0
      %306 = vmatprep.subr.mxu0 0.0
      %307 = vmatpush1.msra.mxu0 0.0
      %308 = vmatprep.subr.mxu0 0.0
      %309 = vmatpush1.msra.mxu0 0.0
      %310 = vmatprep.subr.mxu0 0.0
      %311 = vmatpush1.msra.mxu0 0.0
      %312 = vmatprep.subr.mxu0 0.0
      %313 = vmatpush1.msra.mxu0 0.0
      %314 = vmatprep.subr.mxu0 0.0
      %315 = vmatpush1.msra.mxu0 0.0
      %316 = vmatprep.subr.mxu0 0.0
      %317 = vmatpush1.msra.mxu0 0.0
      %318 = vmatprep.subr.mxu0 0.0
      %319 = vmatpush1.msra.mxu0 0.0
      %320 = vmatprep.subr.mxu0 0.0
      %321 = vmatpush1.msra.mxu0 0.0
      %322 = vmatprep.subr.mxu0 0.0
      %323 = vmatpush1.msra.mxu0 0.0
      %324 = vmatprep.subr.mxu0 0.0
      %325 = vmatpush1.msra.mxu0 0.0
      %326 = vmatprep.subr.mxu0 0.0
      %327 = vmatpush1.msra.mxu0 0.0
      %328 = vmatprep.subr.mxu0 0.0
      %329 = vmatpush1.msra.mxu0 0.0
      %330 = vmatprep.subr.mxu0 0.0
      %331 = vmatpush1.msra.mxu0 0.0
      %332 = vmatprep.subr.mxu0 0.0
      %333 = vmatpush1.msra.mxu0 0.0
      %334 = vmatprep.subr.mxu0 0.0
      %335 = vmatpush1.msra.mxu0 0.0
      %336 = vmatprep.subr.mxu0 0.0
      %337 = vmatpush1.msra.mxu0 0.0
      %338 = vmatprep.subr.mxu0 0.0
      %339 = vmatpush1.msra.mxu0 0.0
      %340 = vmatprep.subr.mxu0 0.0
      %341 = vmatpush1.msra.mxu0 0.0
      %342 = vmatprep.subr.mxu0 0.0
      %343 = vmatpush1.msra.mxu0 0.0
      %344 = vmatprep.subr.mxu0 0.0
      %345 = vmatpush1.msra.mxu0 0.0
      %346 = vmatprep.subr.mxu0 0.0
      %347 = vmatpush1.msra.mxu0 0.0
      %348 = vmatprep.subr.mxu0 0.0
      %349 = vmatpush1.msra.mxu0 0.0
      %350 = vmatprep.subr.mxu0 0.0
      %351 = vmatpush1.msra.mxu0 0.0
      %352 = vmatprep.subr.mxu0 0.0
      %353 = vmatpush1.msra.mxu0 0.0
      %354 = vmatprep.subr.mxu0 0.0
      %355 = vmatpush1.msra.mxu0 0.0
      %356 = vmatprep.subr.mxu0 0.0
      %357 = vmatpush1.msra.mxu0 0.0
      %358 = vmatprep.subr.mxu0 0.0
      %359 = vmatpush1.msra.mxu0 0.0
      %360 = vmatprep.subr.mxu0 0.0
      %361 = vmatpush1.msra.mxu0 0.0
      %362 = vmatprep.mubr.f32.mxu0 0.0
      %363 = vmatmul.mubr.f32.gmra.mrb[0].mxu0 %v296
      %v364 = vpop.f32.mrb[0].mxu0
      %v365 = vadd.f32 0.0, %v364
      %v366 = vpop.f32.mrb[0].mxu0
      %367 = vdwg.mxu0
      %v369 = vsel %vm233, %v279, 0
      %371 = vmatprep.subr.mxu0 0.0
      %372 = vmatpush1.msra.mxu0 %v155
      %373 = vmatprep.subr.mxu0 0.0
      %374 = vmatpush1.msra.mxu0 0.0
      %375 = vmatprep.subr.mxu0 0.0
      %376 = vmatpush1.msra.mxu0 0.0
      %377 = vmatprep.subr.mxu0 0.0
      %378 = vmatpush1.msra.mxu0 0.0
      %379 = vmatprep.subr.mxu0 0.0
      %380 = vmatpush1.msra.mxu0 0.0
      %381 = vmatprep.subr.mxu0 0.0
      %382 = vmatpush1.msra.mxu0 0.0
      %383 = vmatprep.subr.mxu0 0.0
      %384 = vmatpush1.msra.mxu0 0.0
      %385 = vmatprep.subr.mxu0 0.0
      %386 = vmatpush1.msra.mxu0 0.0
      %387 = vmatprep.subr.mxu0 0.0
      %388 = vmatpush1.msra.mxu0 0.0
      %389 = vmatprep.subr.mxu0 0.0
      %390 = vmatpush1.msra.mxu0 0.0
      %391 = vmatprep.subr.mxu0 0.0
      %392 = vmatpush1.msra.mxu0 0.0
      %393 = vmatprep.subr.mxu0 0.0
      %394 = vmatpush1.msra.mxu0 0.0
      %395 = vmatprep.subr.mxu0 0.0
      %396 = vmatpush1.msra.mxu0 0.0
      %397 = vmatprep.subr.mxu0 0.0
      %398 = vmatpush1.msra.mxu0 0.0
      %399 = vmatprep.subr.mxu0 0.0
      %400 = vmatpush1.msra.mxu0 0.0
      %401 = vmatprep.subr.mxu0 0.0
      %402 = vmatpush1.msra.mxu0 0.0
      %403 = vmatprep.subr.mxu0 0.0
      %404 = vmatpush1.msra.mxu0 0.0
      %405 = vmatprep.subr.mxu0 0.0
      %406 = vmatpush1.msra.mxu0 0.0
      %407 = vmatprep.subr.mxu0 0.0
      %408 = vmatpush1.msra.mxu0 0.0
      %409 = vmatprep.subr.mxu0 0.0
      %410 = vmatpush1.msra.mxu0 0.0
      %411 = vmatprep.subr.mxu0 0.0
      %412 = vmatpush1.msra.mxu0 0.0
      %413 = vmatprep.subr.mxu0 0.0
      %414 = vmatpush1.msra.mxu0 0.0
      %415 = vmatprep.subr.mxu0 0.0
      %416 = vmatpush1.msra.mxu0 0.0
      %417 = vmatprep.subr.mxu0 0.0
      %418 = vmatpush1.msra.mxu0 0.0
      %419 = vmatprep.subr.mxu0 0.0
      %420 = vmatpush1.msra.mxu0 0.0
      %421 = vmatprep.subr.mxu0 0.0
      %422 = vmatpush1.msra.mxu0 0.0
      %423 = vmatprep.subr.mxu0 0.0
      %424 = vmatpush1.msra.mxu0 0.0
      %425 = vmatprep.subr.mxu0 0.0
      %426 = vmatpush1.msra.mxu0 0.0
      %427 = vmatprep.subr.mxu0 0.0
      %428 = vmatpush1.msra.mxu0 0.0
      %429 = vmatprep.subr.mxu0 0.0
      %430 = vmatpush1.msra.mxu0 0.0
      %431 = vmatprep.subr.mxu0 0.0
      %432 = vmatpush1.msra.mxu0 0.0
      %433 = vmatprep.subr.mxu0 0.0
      %434 = vmatpush1.msra.mxu0 0.0
      %435 = vmatprep.mubr.f32.mxu0 0.0
      %436 = vmatmul.mubr.f32.gmra.mrb[0].mxu0 %v369
      %v437 = vpop.f32.mrb[0].mxu0
      %v438 = vadd.f32 0.0, %v437
      %v439 = vpop.f32.mrb[0].mxu0
      %440 = vdwg.mxu0
      %v441 = vsel %vm156, %v365, 0.0
      %v442 = vrot.slane %v441, 4
      %v443 = vadd.f32 %v441, %v442
      %v444 = vrot.slane %v443, 2
      %v445 = vadd.f32 %v443, %v444
      %v446 = vrot.slane %v445, 1
      %v447 = vadd.f32 %v445, %v446
      %v448 = vrcp.pop 8.0
      %v449 = vmul.f32 %v447, %v448
      %v450 = vsel %vm156, %v365, -inf
      %v451 = vrot.slane %v450, 4
      %v452 = vmax.f32 %v450, %v451
      %v453 = vrot.slane %v452, 2
      %v454 = vmax.f32 %v452, %v453
      %v455 = vrot.slane %v454, 1
      %v456 = vmax.f32 %v454, %v455
      %v457 = vsel %vm156, %v438, 0.0
      %v458 = vrot.slane %v457, 4
      %v459 = vadd.f32 %v457, %v458
      %v460 = vrot.slane %v459, 2
      %v461 = vadd.f32 %v459, %v460
      %v462 = vrot.slane %v461, 1
      %v463 = vadd.f32 %v461, %v462
      %v464 = vmul.f32 %v463, %v448
      %v465 = vsel %vm156, %v438, -inf
      %v466 = vrot.slane %v465, 4
      %v467 = vmax.f32 %v465, %v466
      %v468 = vrot.slane %v467, 2
      %v469 = vmax.f32 %v467, %v468
      %v470 = vrot.slane %v469, 1
      %v471 = vmax.f32 %v469, %v470
      %473 = vrot.lane.b32.xlu0 %v456, 32
      %v474 = vpop.permute.xlu0 %473
      %477 = vrot.lane.b32.xlu0 %v464, 64
      %v478 = vpop.permute.xlu0 %477
      %481 = vrot.lane.b32.xlu0 %v471, 96
      %v482 = vpop.permute.xlu0 %481
      %v484 = vsel %vm156, %v449, %v474
      %vm485 = vcmask 523264
      %v486 = vsel %vm485, %v484, %v478
      %vm487 = vcmask 785408
      %v488 = vsel %vm487, %v486, %v482
      %489 = vst [vmem:[%s153] sm:$0x1] %v488
      %p490 = scmp.lt.s32.totalorder %s13, 1
      %s491 = scalar_select %p490, %s13, 1
      %s492 = scalar_lea.vmem %s2, %s491
      // Predicated region
      $region29: #{enhanced_rcnn_forward.7} parent=27 // pred_check
        %p493 = pneg %p83
      $region30: #{enhanced_rcnn_forward.7} parent=27 // pred_check_branch
        %495 = sbr.rel (%p493) target = $region32
      $region31: #{enhanced_rcnn_forward.7} parent=27 // pred_region
        _
      $region32: #{enhanced_rcnn_forward.7} parent=27 // pred_fallthru
        _
    $region28: #{enhanced_rcnn_forward.7} parent=5 // pred_fallthru
      _
    %p496 = scmp.le.s32.totalorder 2, %s8
    // Predicated region
    $region33: #{enhanced_rcnn_forward.7} parent=5 // pred_check
      %p497 = pneg %p496
    $region34: #{enhanced_rcnn_forward.7} parent=5 // pred_check_branch
      %499 = sbr.rel (%p497) target = $region36
    $region35: #{enhanced_rcnn_forward.7} parent=5 // pred_region
      %s500 = ssub.s32 %s8, 2
      // Predicated region
      $region37: #{enhanced_rcnn_forward.7} parent=35 // pred_check
        %p501 = pneg %p89
      $region38: #{enhanced_rcnn_forward.7} parent=35 // pred_check_branch
        %503 = sbr.rel (%p501) target = $region40
      $region39: #{enhanced_rcnn_forward.7} parent=35 // pred_region
        %p504 = scmp.lt.s32.totalorder %s14, 1
        %s505 = scalar_select %p504, %s14, 1
        %s506 = scalar_lea.vmem %s2, %s505
      $region40: #{enhanced_rcnn_forward.7} parent=35 // pred_fallthru
        _
    $region36: #{enhanced_rcnn_forward.7} parent=5 // pred_fallthru
      _
  $region6: #{enhanced_rcnn_forward.7} parent=0 // loop_footer
    %s12 = sadd.s32 1, %s8
  $region7: #{enhanced_rcnn_forward.7} parent=0 // loop_footer_branch
    %7 = sbr.rel target = $region3
  $region8: #{enhanced_rcnn_forward.7} parent=0 // loop_exit
    _

// kernel: enhanced_rcnn_forward.9
$region0: #{enhanced_rcnn_forward.9}
  #allocation0 [shape = 'u32[]', space=smem, size = 0x4, offset = 0x4, fixed_abs, tag = 'smem constant byte address 0x4 - core index']
  #allocation1 [shape = 'u32[144,128]{1,0:T(1,128)}', space=vmem, size = 0x12000, scoped, tag = 'internal scratch']
  #allocation2 [shape = 'f32[1,1]{1,0:T(1,128)S(1)}', space=vmem, size = 0x200, scoped, tag = 'scoped memory for enhanced_rcnn_forward.9']
  %s0 = inlined_call_operand.vmem [shape: f32[2,112], index: 0, kind: input, shape index: {}]
  %s1 = inlined_call_operand.vmem [shape: f32[2,112], index: 1, kind: input, shape index: {}]
  %s2 = inlined_call_operand.vmem [shape: f32[112,16], index: 2, kind: input, shape index: {}]
  %s3 = inlined_call_operand.vmem [shape: f32[1,16], index: 3, kind: input, shape index: {}]
  %s4 = inlined_call_operand.vmem [shape: f32[112,16], index: 4, kind: input, shape index: {}]
  %s5 = inlined_call_operand.vmem [shape: f32[1,16], index: 5, kind: input, shape index: {}]
  %s6 = inlined_call_operand.vmem [shape: f32[16,1], index: 6, kind: input, shape index: {}]
  %s7 = inlined_call_operand.vmem [shape: f32[16,1], index: 7, kind: input, shape index: {}]
  %s8 = inlined_call_operand.<no memory space> [shape: f32[1,1], index: 8, kind: input, shape index: {}]
  %s9 = inlined_call_operand.vmem [shape: f32[2,1], index: 9, kind: output, shape index: {}]
  %s10 = sld [smem:[#allocation0]]
  $region46: #{enhanced_rcnn_forward.9} parent=0
    _
  %s12 = ssub.s32 1, %s10
  %s13 = scalar_select 0, %s12, %s10
  %v14 = vstv %s8
  %15 = vst [vmem:[#allocation2] sm:$0x1] %v14
  // Predicated region
  $region2: #{enhanced_rcnn_forward.9} parent=0 // pred_check
    _
  $region3: #{enhanced_rcnn_forward.9} parent=0 // pred_check_branch
    %17 = sbr.rel (0) target = $region5
  $region4: #{enhanced_rcnn_forward.9} parent=0 // pred_region
    _
  $region5: #{enhanced_rcnn_forward.9} parent=0 // pred_fallthru
    _
  // Predicated region
  $region6: #{enhanced_rcnn_forward.9} parent=0 // pred_check
    _
  $region7: #{enhanced_rcnn_forward.9} parent=0 // pred_check_branch
    %19 = sbr.rel (0) target = $region9
  $region8: #{enhanced_rcnn_forward.9} parent=0 // pred_region
    _
  $region9: #{enhanced_rcnn_forward.9} parent=0 // pred_fallthru
    _
  // Predicated region
  $region10: #{enhanced_rcnn_forward.9} parent=0 // pred_check
    _
  $region11: #{enhanced_rcnn_forward.9} parent=0 // pred_check_branch
    %21 = sbr.rel (0) target = $region13
  $region12: #{enhanced_rcnn_forward.9} parent=0 // pred_region
    _
  $region13: #{enhanced_rcnn_forward.9} parent=0 // pred_fallthru
    _
  // Predicated region
  $region14: #{enhanced_rcnn_forward.9} parent=0 // pred_check
    _
  $region15: #{enhanced_rcnn_forward.9} parent=0 // pred_check_branch
    %23 = sbr.rel (0) target = $region17
  $region16: #{enhanced_rcnn_forward.9} parent=0 // pred_region
    _
  $region17: #{enhanced_rcnn_forward.9} parent=0 // pred_fallthru
    _
  // Predicated region
  $region18: #{enhanced_rcnn_forward.9} parent=0 // pred_check
    _
  $region19: #{enhanced_rcnn_forward.9} parent=0 // pred_check_branch
    %25 = sbr.rel (0) target = $region21
  $region20: #{enhanced_rcnn_forward.9} parent=0 // pred_region
    _
  $region21: #{enhanced_rcnn_forward.9} parent=0 // pred_fallthru
    _
  // Predicated region
  $region22: #{enhanced_rcnn_forward.9} parent=0 // pred_check
    _
  $region23: #{enhanced_rcnn_forward.9} parent=0 // pred_check_branch
    %27 = sbr.rel (0) target = $region25
  $region24: #{enhanced_rcnn_forward.9} parent=0 // pred_region
    _
  $region25: #{enhanced_rcnn_forward.9} parent=0 // pred_fallthru
    _
  // Predicated region
  $region26: #{enhanced_rcnn_forward.9} parent=0 // pred_check
    _
  $region27: #{enhanced_rcnn_forward.9} parent=0 // pred_check_branch
    %29 = sbr.rel (0) target = $region29
  $region28: #{enhanced_rcnn_forward.9} parent=0 // pred_region
    _
  $region29: #{enhanced_rcnn_forward.9} parent=0 // pred_fallthru
    _
  // Predicated region
  $region30: #{enhanced_rcnn_forward.9} parent=0 // pred_check
    _
  $region31: #{enhanced_rcnn_forward.9} parent=0 // pred_check_branch
    %31 = sbr.rel (0) target = $region33
  $region32: #{enhanced_rcnn_forward.9} parent=0 // pred_region
    _
  $region33: #{enhanced_rcnn_forward.9} parent=0 // pred_fallthru
    _
  // Predicated region
  $region34: #{enhanced_rcnn_forward.9} parent=0 // pred_check
    _
  $region35: #{enhanced_rcnn_forward.9} parent=0 // pred_check_branch
    %33 = sbr.rel (0) target = $region37
  $region36: #{enhanced_rcnn_forward.9} parent=0 // pred_region
    _
  $region37: #{enhanced_rcnn_forward.9} parent=0 // pred_fallthru
    _
  %v34 = vld [vmem:[%s0] sm:$0x3]
  %v35 = vld [vmem:[%s1] sm:$0x3]
  %v36 = vsub.f32 %v34, %v35
  %v37 = vld [vmem:[%s2] sm:$0xff]
  %v38 = vld [vmem:[%s2 + $0x8] sm:$0xff]
  %v39 = vld [vmem:[%s2 + $0x10] sm:$0xff]
  %v40 = vld [vmem:[%s2 + $0x18] sm:$0xff]
  %v41 = vld [vmem:[%s2 + $0x20] sm:$0xff]
  %v42 = vld [vmem:[%s2 + $0x28] sm:$0xff]
  %v43 = vld [vmem:[%s2 + $0x30] sm:$0xff]
  %v44 = vld [vmem:[%s2 + $0x38] sm:$0xff]
  %v45 = vld [vmem:[%s2 + $0x40] sm:$0xff]
  %v46 = vld [vmem:[%s2 + $0x48] sm:$0xff]
  %v47 = vld [vmem:[%s2 + $0x50] sm:$0xff]
  %v48 = vld [vmem:[%s2 + $0x58] sm:$0xff]
  %v49 = vld [vmem:[%s2 + $0x60] sm:$0xff]
  %v50 = vld [vmem:[%s2 + $0x68] sm:$0xff]
  %v51 = vld [vmem:[%s3] sm:$0x1]
  %v53 = vlaneseq
  %v54 = vshrl.u32 %v53, 7
  %v55 = vsub.s32 0, %v54
  %v56 = vrot.slane %v51, %v55
  %vm58 = vcmask 916480
  %v60 = vsel %vm58, %v36, 0
  %62 = vmatprep.subr.mxu0 0.0
  %63 = vmatpush1.msra.mxu0 %v37
  %64 = vmatprep.subr.mxu0 0.0
  %65 = vmatpush1.msra.mxu0 %v38
  %66 = vmatprep.subr.mxu0 0.0
  %67 = vmatpush1.msra.mxu0 %v39
  %68 = vmatprep.subr.mxu0 0.0
  %69 = vmatpush1.msra.mxu0 %v40
  %70 = vmatprep.subr.mxu0 0.0
  %71 = vmatpush1.msra.mxu0 %v41
  %72 = vmatprep.subr.mxu0 0.0
  %73 = vmatpush1.msra.mxu0 %v42
  %74 = vmatprep.subr.mxu0 0.0
  %75 = vmatpush1.msra.mxu0 %v43
  %76 = vmatprep.subr.mxu0 0.0
  %77 = vmatpush1.msra.mxu0 %v44
  %78 = vmatprep.subr.mxu0 0.0
  %79 = vmatpush1.msra.mxu0 %v45
  %80 = vmatprep.subr.mxu0 0.0
  %81 = vmatpush1.msra.mxu0 %v46
  %82 = vmatprep.subr.mxu0 0.0
  %83 = vmatpush1.msra.mxu0 %v47
  %84 = vmatprep.subr.mxu0 0.0
  %85 = vmatpush1.msra.mxu0 %v48
  %86 = vmatprep.subr.mxu0 0.0
  %87 = vmatpush1.msra.mxu0 %v49
  %88 = vmatprep.subr.mxu0 0.0
  %89 = vmatpush1.msra.mxu0 %v50
  %90 = vmatprep.subr.mxu0 0.0
  %91 = vmatpush1.msra.mxu0 0.0
  %92 = vmatprep.subr.mxu0 0.0
  %93 = vmatpush1.msra.mxu0 0.0
  %94 = vmatprep.subr.mxu0 0.0
  %95 = vmatpush1.msra.mxu0 0.0
  %96 = vmatprep.subr.mxu0 0.0
  %97 = vmatpush1.msra.mxu0 0.0
  %98 = vmatprep.subr.mxu0 0.0
  %99 = vmatpush1.msra.mxu0 0.0
  %100 = vmatprep.subr.mxu0 0.0
  %101 = vmatpush1.msra.mxu0 0.0
  %102 = vmatprep.subr.mxu0 0.0
  %103 = vmatpush1.msra.mxu0 0.0
  %104 = vmatprep.subr.mxu0 0.0
  %105 = vmatpush1.msra.mxu0 0.0
  %106 = vmatprep.subr.mxu0 0.0
  %107 = vmatpush1.msra.mxu0 0.0
  %108 = vmatprep.subr.mxu0 0.0
  %109 = vmatpush1.msra.mxu0 0.0
  %110 = vmatprep.subr.mxu0 0.0
  %111 = vmatpush1.msra.mxu0 0.0
  %112 = vmatprep.subr.mxu0 0.0
  %113 = vmatpush1.msra.mxu0 0.0
  %114 = vmatprep.subr.mxu0 0.0
  %115 = vmatpush1.msra.mxu0 0.0
  %116 = vmatprep.subr.mxu0 0.0
  %117 = vmatpush1.msra.mxu0 0.0
  %118 = vmatprep.subr.mxu0 0.0
  %119 = vmatpush1.msra.mxu0 0.0
  %120 = vmatprep.subr.mxu0 0.0
  %121 = vmatpush1.msra.mxu0 0.0
  %122 = vmatprep.subr.mxu0 0.0
  %123 = vmatpush1.msra.mxu0 0.0
  %124 = vmatprep.subr.mxu0 0.0
  %125 = vmatpush1.msra.mxu0 0.0
  %126 = vmatprep.mubr.f32.mxu0 0.0
  %127 = vmatmul.mubr.f32.gmra.mrb[0].mxu0 %v60
  %v128 = vpop.f32.mrb[0].mxu0
  %v129 = vadd.f32 %v56, %v128
  %v130 = vpop.f32.mrb[0].mxu0
  %131 = vdwg.mxu0
  %v132 = vmax.f32 %v129, 0.0
  %v133 = vmul.f32 %v34, %v35
  %v134 = vld [vmem:[%s4] sm:$0xff]
  %v135 = vld [vmem:[%s4 + $0x8] sm:$0xff]
  %v136 = vld [vmem:[%s4 + $0x10] sm:$0xff]
  %v137 = vld [vmem:[%s4 + $0x18] sm:$0xff]
  %v138 = vld [vmem:[%s4 + $0x20] sm:$0xff]
  %v139 = vld [vmem:[%s4 + $0x28] sm:$0xff]
  %v140 = vld [vmem:[%s4 + $0x30] sm:$0xff]
  %v141 = vld [vmem:[%s4 + $0x38] sm:$0xff]
  %v142 = vld [vmem:[%s4 + $0x40] sm:$0xff]
  %v143 = vld [vmem:[%s4 + $0x48] sm:$0xff]
  %v144 = vld [vmem:[%s4 + $0x50] sm:$0xff]
  %v145 = vld [vmem:[%s4 + $0x58] sm:$0xff]
  %v146 = vld [vmem:[%s4 + $0x60] sm:$0xff]
  %v147 = vld [vmem:[%s4 + $0x68] sm:$0xff]
  %v148 = vld [vmem:[%s5] sm:$0x1]
  %v150 = vlaneseq
  %v151 = vshrl.u32 %v150, 7
  %v152 = vsub.s32 0, %v151
  %v153 = vrot.slane %v148, %v152
  %v156 = vsel %vm58, %v133, 0
  %158 = vmatprep.subr.mxu0 0.0
  %159 = vmatpush1.msra.mxu0 %v134
  %160 = vmatprep.subr.mxu0 0.0
  %161 = vmatpush1.msra.mxu0 %v135
  %162 = vmatprep.subr.mxu0 0.0
  %163 = vmatpush1.msra.mxu0 %v136
  %164 = vmatprep.subr.mxu0 0.0
  %165 = vmatpush1.msra.mxu0 %v137
  %166 = vmatprep.subr.mxu0 0.0
  %167 = vmatpush1.msra.mxu0 %v138
  %168 = vmatprep.subr.mxu0 0.0
  %169 = vmatpush1.msra.mxu0 %v139
  %170 = vmatprep.subr.mxu0 0.0
  %171 = vmatpush1.msra.mxu0 %v140
  %172 = vmatprep.subr.mxu0 0.0
  %173 = vmatpush1.msra.mxu0 %v141
  %174 = vmatprep.subr.mxu0 0.0
  %175 = vmatpush1.msra.mxu0 %v142
  %176 = vmatprep.subr.mxu0 0.0
  %177 = vmatpush1.msra.mxu0 %v143
  %178 = vmatprep.subr.mxu0 0.0
  %179 = vmatpush1.msra.mxu0 %v144
  %180 = vmatprep.subr.mxu0 0.0
  %181 = vmatpush1.msra.mxu0 %v145
  %182 = vmatprep.subr.mxu0 0.0
  %183 = vmatpush1.msra.mxu0 %v146
  %184 = vmatprep.subr.mxu0 0.0
  %185 = vmatpush1.msra.mxu0 %v147
  %186 = vmatprep.subr.mxu0 0.0
  %187 = vmatpush1.msra.mxu0 0.0
  %188 = vmatprep.subr.mxu0 0.0
  %189 = vmatpush1.msra.mxu0 0.0
  %190 = vmatprep.subr.mxu0 0.0
  %191 = vmatpush1.msra.mxu0 0.0
  %192 = vmatprep.subr.mxu0 0.0
  %193 = vmatpush1.msra.mxu0 0.0
  %194 = vmatprep.subr.mxu0 0.0
  %195 = vmatpush1.msra.mxu0 0.0
  %196 = vmatprep.subr.mxu0 0.0
  %197 = vmatpush1.msra.mxu0 0.0
  %198 = vmatprep.subr.mxu0 0.0
  %199 = vmatpush1.msra.mxu0 0.0
  %200 = vmatprep.subr.mxu0 0.0
  %201 = vmatpush1.msra.mxu0 0.0
  %202 = vmatprep.subr.mxu0 0.0
  %203 = vmatpush1.msra.mxu0 0.0
  %204 = vmatprep.subr.mxu0 0.0
  %205 = vmatpush1.msra.mxu0 0.0
  %206 = vmatprep.subr.mxu0 0.0
  %207 = vmatpush1.msra.mxu0 0.0
  %208 = vmatprep.subr.mxu0 0.0
  %209 = vmatpush1.msra.mxu0 0.0
  %210 = vmatprep.subr.mxu0 0.0
  %211 = vmatpush1.msra.mxu0 0.0
  %212 = vmatprep.subr.mxu0 0.0
  %213 = vmatpush1.msra.mxu0 0.0
  %214 = vmatprep.subr.mxu0 0.0
  %215 = vmatpush1.msra.mxu0 0.0
  %216 = vmatprep.subr.mxu0 0.0
  %217 = vmatpush1.msra.mxu0 0.0
  %218 = vmatprep.subr.mxu0 0.0
  %219 = vmatpush1.msra.mxu0 0.0
  %220 = vmatprep.subr.mxu0 0.0
  %221 = vmatpush1.msra.mxu0 0.0
  %222 = vmatprep.mubr.f32.mxu0 0.0
  %223 = vmatmul.mubr.f32.gmra.mrb[0].mxu0 %v156
  %v224 = vpop.f32.mrb[0].mxu0
  %v225 = vadd.f32 %v153, %v224
  %v226 = vpop.f32.mrb[0].mxu0
  %227 = vdwg.mxu0
  %v228 = vmax.f32 %v225, 0.0
  %v229 = vld [vmem:[%s6] sm:$0xff]
  %v230 = vld [vmem:[%s6 + $0x8] sm:$0xff]
  %v231 = vld [vmem:[%s7] sm:$0xff]
  %v232 = vld [vmem:[%s7 + $0x8] sm:$0xff]
  %vm233 = vcmask 130048
  %v235 = vsel %vm233, %v228, 0
  %237 = vmatprep.subr.mxu0 0.0
  %238 = vmatpush1.msra.mxu0 %v231
  %239 = vmatprep.subr.mxu0 0.0
  %240 = vmatpush1.msra.mxu0 %v232
  %241 = vmatprep.subr.mxu0 0.0
  %242 = vmatpush1.msra.mxu0 0.0
  %243 = vmatprep.subr.mxu0 0.0
  %244 = vmatpush1.msra.mxu0 0.0
  %245 = vmatprep.subr.mxu0 0.0
  %246 = vmatpush1.msra.mxu0 0.0
  %247 = vmatprep.subr.mxu0 0.0
  %248 = vmatpush1.msra.mxu0 0.0
  %249 = vmatprep.subr.mxu0 0.0
  %250 = vmatpush1.msra.mxu0 0.0
  %251 = vmatprep.subr.mxu0 0.0
  %252 = vmatpush1.msra.mxu0 0.0
  %253 = vmatprep.subr.mxu0 0.0
  %254 = vmatpush1.msra.mxu0 0.0
  %255 = vmatprep.subr.mxu0 0.0
  %256 = vmatpush1.msra.mxu0 0.0
  %257 = vmatprep.subr.mxu0 0.0
  %258 = vmatpush1.msra.mxu0 0.0
  %259 = vmatprep.subr.mxu0 0.0
  %260 = vmatpush1.msra.mxu0 0.0
  %261 = vmatprep.subr.mxu0 0.0
  %262 = vmatpush1.msra.mxu0 0.0
  %263 = vmatprep.subr.mxu0 0.0
  %264 = vmatpush1.msra.mxu0 0.0
  %265 = vmatprep.subr.mxu0 0.0
  %266 = vmatpush1.msra.mxu0 0.0
  %267 = vmatprep.subr.mxu0 0.0
  %268 = vmatpush1.msra.mxu0 0.0
  %269 = vmatprep.subr.mxu0 0.0
  %270 = vmatpush1.msra.mxu0 0.0
  %271 = vmatprep.subr.mxu0 0.0
  %272 = vmatpush1.msra.mxu0 0.0
  %273 = vmatprep.subr.mxu0 0.0
  %274 = vmatpush1.msra.mxu0 0.0
  %275 = vmatprep.subr.mxu0 0.0
  %276 = vmatpush1.msra.mxu0 0.0
  %277 = vmatprep.subr.mxu0 0.0
  %278 = vmatpush1.msra.mxu0 0.0
  %279 = vmatprep.subr.mxu0 0.0
  %280 = vmatpush1.msra.mxu0 0.0
  %281 = vmatprep.subr.mxu0 0.0
  %282 = vmatpush1.msra.mxu0 0.0
  %283 = vmatprep.subr.mxu0 0.0
  %284 = vmatpush1.msra.mxu0 0.0
  %285 = vmatprep.subr.mxu0 0.0
  %286 = vmatpush1.msra.mxu0 0.0
  %287 = vmatprep.subr.mxu0 0.0
  %288 = vmatpush1.msra.mxu0 0.0
  %289 = vmatprep.subr.mxu0 0.0
  %290 = vmatpush1.msra.mxu0 0.0
  %291 = vmatprep.subr.mxu0 0.0
  %292 = vmatpush1.msra.mxu0 0.0
  %293 = vmatprep.subr.mxu0 0.0
  %294 = vmatpush1.msra.mxu0 0.0
  %295 = vmatprep.subr.mxu0 0.0
  %296 = vmatpush1.msra.mxu0 0.0
  %297 = vmatprep.subr.mxu0 0.0
  %298 = vmatpush1.msra.mxu0 0.0
  %299 = vmatprep.subr.mxu0 0.0
  %300 = vmatpush1.msra.mxu0 0.0
  %301 = vmatprep.mubr.f32.mxu0 0.0
  %302 = vmatmul.mubr.f32.gmra.mrb[0].mxu0 %v235
  %v303 = vpop.f32.mrb[0].mxu0
  %v304 = vadd.f32 0.0, %v303
  %v305 = vpop.f32.mrb[0].mxu0
  %306 = vdwg.mxu0
  %v308 = vsel %vm233, %v132, 0
  %310 = vmatprep.subr.mxu0 0.0
  %311 = vmatpush1.msra.mxu0 %v229
  %312 = vmatprep.subr.mxu0 0.0
  %313 = vmatpush1.msra.mxu0 %v230
  %314 = vmatprep.subr.mxu0 0.0
  %315 = vmatpush1.msra.mxu0 0.0
  %316 = vmatprep.subr.mxu0 0.0
  %317 = vmatpush1.msra.mxu0 0.0
  %318 = vmatprep.subr.mxu0 0.0
  %319 = vmatpush1.msra.mxu0 0.0
  %320 = vmatprep.subr.mxu0 0.0
  %321 = vmatpush1.msra.mxu0 0.0
  %322 = vmatprep.subr.mxu0 0.0
  %323 = vmatpush1.msra.mxu0 0.0
  %324 = vmatprep.subr.mxu0 0.0
  %325 = vmatpush1.msra.mxu0 0.0
  %326 = vmatprep.subr.mxu0 0.0
  %327 = vmatpush1.msra.mxu0 0.0
  %328 = vmatprep.subr.mxu0 0.0
  %329 = vmatpush1.msra.mxu0 0.0
  %330 = vmatprep.subr.mxu0 0.0
  %331 = vmatpush1.msra.mxu0 0.0
  %332 = vmatprep.subr.mxu0 0.0
  %333 = vmatpush1.msra.mxu0 0.0
  %334 = vmatprep.subr.mxu0 0.0
  %335 = vmatpush1.msra.mxu0 0.0
  %336 = vmatprep.subr.mxu0 0.0
  %337 = vmatpush1.msra.mxu0 0.0
  %338 = vmatprep.subr.mxu0 0.0
  %339 = vmatpush1.msra.mxu0 0.0
  %340 = vmatprep.subr.mxu0 0.0
  %341 = vmatpush1.msra.mxu0 0.0
  %342 = vmatprep.subr.mxu0 0.0
  %343 = vmatpush1.msra.mxu0 0.0
  %344 = vmatprep.subr.mxu0 0.0
  %345 = vmatpush1.msra.mxu0 0.0
  %346 = vmatprep.subr.mxu0 0.0
  %347 = vmatpush1.msra.mxu0 0.0
  %348 = vmatprep.subr.mxu0 0.0
  %349 = vmatpush1.msra.mxu0 0.0
  %350 = vmatprep.subr.mxu0 0.0
  %351 = vmatpush1.msra.mxu0 0.0
  %352 = vmatprep.subr.mxu0 0.0
  %353 = vmatpush1.msra.mxu0 0.0
  %354 = vmatprep.subr.mxu0 0.0
  %355 = vmatpush1.msra.mxu0 0.0
  %356 = vmatprep.subr.mxu0 0.0
  %357 = vmatpush1.msra.mxu0 0.0
  %358 = vmatprep.subr.mxu0 0.0
  %359 = vmatpush1.msra.mxu0 0.0
  %360 = vmatprep.subr.mxu0 0.0
  %361 = vmatpush1.msra.mxu0 0.0
  %362 = vmatprep.subr.mxu0 0.0
  %363 = vmatpush1.msra.mxu0 0.0
  %364 = vmatprep.subr.mxu0 0.0
  %365 = vmatpush1.msra.mxu0 0.0
  %366 = vmatprep.subr.mxu0 0.0
  %367 = vmatpush1.msra.mxu0 0.0
  %368 = vmatprep.subr.mxu0 0.0
  %369 = vmatpush1.msra.mxu0 0.0
  %370 = vmatprep.subr.mxu0 0.0
  %371 = vmatpush1.msra.mxu0 0.0
  %372 = vmatprep.subr.mxu0 0.0
  %373 = vmatpush1.msra.mxu0 0.0
  %374 = vmatprep.mubr.f32.mxu0 0.0
  %375 = vmatmul.mubr.f32.gmra.mrb[0].mxu0 %v308
  %v376 = vpop.f32.mrb[0].mxu0
  %v377 = vadd.f32 %v304, %v376
  %v378 = vpop.f32.mrb[0].mxu0
  %379 = vdwg.mxu0
  %v380 = vld [vmem:[#allocation2] sm:$0x1]
  %v382 = vlaneseq
  %v383 = vshrl.u32 %v382, 7
  %v384 = vsub.s32 0, %v383
  %v385 = vrot.slane %v380, %v384
  %v387 = vadd.f32 %v377, %v385
  %v388 = vxor.u32 %v387, 2147483648
  %v389 = vmul.f32 %v388, 1.442695
  %v390 = vpow.pop %v389
  %v391 = vadd.f32 %v390, 1.0
  %v392 = vrcp.pop %v391
  %v393 = vmul.f32 1.0, %v392
  %vm394 = vcmask 1024
  %395 = vst.msk [vmem:[%s9] sm:$0x3] %vm394, %v393
  // Predicated region
  $region38: #{enhanced_rcnn_forward.9} parent=0 // pred_check
    _
  $region39: #{enhanced_rcnn_forward.9} parent=0 // pred_check_branch
    %397 = sbr.rel (0) target = $region41
  $region40: #{enhanced_rcnn_forward.9} parent=0 // pred_region
    _
  $region41: #{enhanced_rcnn_forward.9} parent=0 // pred_fallthru
    _
  // Predicated region
  $region42: #{enhanced_rcnn_forward.9} parent=0 // pred_check
    _
  $region43: #{enhanced_rcnn_forward.9} parent=0 // pred_check_branch
    %399 = sbr.rel (0) target = $region45
  $region44: #{enhanced_rcnn_forward.9} parent=0 // pred_region
    _
  $region45: #{enhanced_rcnn_forward.9} parent=0 // pred_fallthru
    _

</llo_original>
